<compile_context>
chip_gen: v6e
topology: v6e:2x2x1
jax: 0.10.0
libtpu: 0.0.40
codegen_flags: <defaults>
</compile_context>

<pallas_src>
import jax
import jax.numpy as jnp
from jax import lax
from jax.experimental import pallas as pl
from jax.experimental.pallas import tpu as pltpu


# ----------------------------------------------------------------------------
# Small helpers
# ----------------------------------------------------------------------------
def _round_up(n, m):
    return ((n + m - 1) // m) * m


def _m_tiling(M):
    """Choose (num_tiles, tile_m) for the lane (M = B*Ho*Wo) grid axis."""
    if M <= 384:                        # one small block: minimal per-step overhead
        return 1, _round_up(M, 128)
    ntiles = max(2, -(-M // 1024))      # >=2 so both v7x TCs get work; ~1K lanes max/tile
    return ntiles, _round_up(-(-M // ntiles), 128)


# ----------------------------------------------------------------------------
# Pallas kernels
# ----------------------------------------------------------------------------
def _mm_lane_dense(wmat, patches, bias, *, relu, pool_groups=1):
    """out(N/pg, M) = act( group_max_pg( wmat(N,K) @ patches(K,M) ) + bias ).

    Transposed (lane-dense) orientation: large M on the 128-lane axis of the output,
    gridded over M with "parallel" semantics (megacore on v7x)."""
    N, K = wmat.shape
    K2, M = patches.shape
    assert K == K2 and N % pool_groups == 0
    NO = N // pool_groups
    ntiles, tm = _m_tiling(M)
    Mp = ntiles * tm
    if Mp != M:
        patches = jnp.pad(patches, ((0, 0), (0, Mp - M)))

    def kernel(w_ref, p_ref, b_ref, o_ref):
        y = jnp.dot(w_ref[...], p_ref[...], preferred_element_type=jnp.float32)
        if pool_groups > 1:             # fused 2x2 max-pool: phases packed along rows
            m = y[0:NO]
            for g in range(1, pool_groups):
                m = jnp.maximum(m, y[g * NO:(g + 1) * NO])
            y = m
        y = y + b_ref[...]
        if relu:
            y = jnp.maximum(y, 0.0)
        o_ref[...] = y.astype(o_ref.dtype)

    out = pl.pallas_call(
        kernel,
        out_shape=jax.ShapeDtypeStruct((NO, Mp), jnp.float32),
        grid=(ntiles,),
        in_specs=[
            pl.BlockSpec((N, K), lambda m: (0, 0)),    # weights (VMEM-resident, tiny)
            pl.BlockSpec((K, tm), lambda m: (0, m)),   # patch tile along lane axis
            pl.BlockSpec((NO, 1), lambda m: (0, 0)),   # bias column
        ],
        out_specs=pl.BlockSpec((NO, tm), lambda m: (0, m)),
        compiler_params=pltpu.CompilerParams(dimension_semantics=("parallel",)),
    )(wmat, patches, bias)
    return out[:, :M] if Mp != M else out


def _mlp3(x, w1, b1, w2, b2, w3, b3):
    """Fused classifier: Linear+ReLU -> Linear+ReLU -> Linear, one pallas_call."""

    def kernel(x_ref, w1_ref, b1_ref, w2_ref, b2_ref, w3_ref, b3_ref, o_ref):
        h = jnp.dot(x_ref[...], w1_ref[...], preferred_element_type=jnp.float32)
        h = jnp.maximum(h + b1_ref[...], 0.0)
        h = jnp.dot(h, w2_ref[...], preferred_element_type=jnp.float32)
        h = jnp.maximum(h + b2_ref[...], 0.0)
        h = jnp.dot(h, w3_ref[...], preferred_element_type=jnp.float32)
        o_ref[...] = (h + b3_ref[...]).astype(o_ref.dtype)

    vmem = pl.BlockSpec(memory_space=pltpu.MemorySpace.VMEM)
    return pl.pallas_call(
        kernel,
        out_shape=jax.ShapeDtypeStruct((x.shape[0], w3.shape[1]), jnp.float32),
        in_specs=[vmem] * 7,
        out_specs=vmem,
    )(x, w1, b1, w2, b2, w3, b3)


# ----------------------------------------------------------------------------
# Layer wrappers (glue = transpose-free im2col; compute = Pallas kernels)
# ----------------------------------------------------------------------------
def _im2col_T(x, kh, kw, stride=1):
    """x (C,B,H,W) -> patches^T (C*kh*kw, B*Ho*Wo); rows ordered (c, r, s)."""
    C, B, H, W = x.shape
    Ho = (H - kh) // stride + 1
    Wo = (W - kw) // stride + 1
    cols = [x[:, :, r:r + stride * (Ho - 1) + 1:stride,
                  s:s + stride * (Wo - 1) + 1:stride]
            for r in range(kh) for s in range(kw)]
    p = jnp.stack(cols, axis=1)                        # (C, kh*kw, B, Ho, Wo)
    return p.reshape(C * kh * kw, B * Ho * Wo), Ho, Wo


def conv2d(x, wmat, bias, *, kh, kw, relu):
    """Valid conv, stride 1. x: (C,B,H,W); wmat: (OC, C*kh*kw) prefolded."""
    _, B, _, _ = x.shape
    p, Ho, Wo = _im2col_T(x, kh, kw)
    out = _mm_lane_dense(wmat, p, bias, relu=relu)
    return out.reshape(-1, B, Ho, Wo)


def conv2d_relu_maxpool(x, wmat4, bias, *, kh, kw, oc):
    """Fused Conv(valid, stride 1) + ReLU + MaxPool2d(2,2).
    wmat4: (4*OCp, C*(kh+1)*(kw+1)) — the 4 pool phases packed along rows,
    OCp = OC rounded up to 8 for sublane-aligned group slices."""
    _, B, _, _ = x.shape
    p, Hp, Wp = _im2col_T(x, kh + 1, kw + 1, stride=2)
    out = _mm_lane_dense(wmat4, p, bias, relu=True, pool_groups=4)
    return out[:oc].reshape(oc, B, Hp, Wp)


def conv_transpose2d_s2(x, wmat4, bias4, *, sub_k, relu):
    """ConvTranspose2d(stride=2, padding=0) via sub-pixel decomposition.
    wmat4 packs the 4 output phases along rows: (4*OC, C*sub_k*sub_k).
    sub_k = 2 for a 4x4 kernel (input padded by 1), 1 for a 2x2 kernel."""
    C, B, H, W = x.shape
    if sub_k == 2:
        xp = jnp.pad(x, ((0, 0), (0, 0), (1, 1), (1, 1)))
        p, Hp, Wp = _im2col_T(xp, 2, 2)                # Hp = H+1, Wp = W+1
    else:
        p, Hp, Wp = x.reshape(C, B * H * W), H, W
    out = _mm_lane_dense(wmat4, p, bias4, relu=relu)   # (4*OC, B*Hp*Wp)
    OC = out.shape[0] // 4
    y = out.reshape(2, 2, OC, B, Hp, Wp)
    # interleave phases: Out[oc, b, 2u+p, 2v+q] = y[p, q, oc, b, u, v]
    return y.transpose(2, 3, 4, 0, 5, 1).reshape(OC, B, 2 * Hp, 2 * Wp)


# ----------------------------------------------------------------------------
# Parameters: raw PyTorch-shaped synthetic init + one-time layout folding
# ----------------------------------------------------------------------------
def init_params(key):
    specs = {
        # encoder
        "e1_w": (32, 1, 3, 3), "e1_b": (32,),
        "e2_w": (16, 32, 4, 4), "e2_b": (16,),
        "e3_w": (16, 16, 4, 4), "e3_b": (16,),
        # decoder (ConvTranspose weights are (in, out, kh, kw))
        "d1_w": (16, 16, 4, 4), "d1_b": (16,),
        "d2_w": (16, 1, 2, 2), "d2_b": (1,),
        # bloc
        "b1_w": (6, 1, 5, 5), "b1_b": (6,),
        "b2_w": (16, 6, 5, 5), "b2_b": (16,),
        # classification
        "c1_w": (120, 256), "c1_b": (120,),
        "c2_w": (84, 120), "c2_b": (84,),
        "c3_w": (10, 84), "c3_b": (10,),
    }
    params = {}
    keys = jax.random.split(key, len(specs))
    for k, (name, shape) in zip(keys, sorted(specs.items())):
        params[name] = 0.05 * jax.random.normal(k, shape, dtype=jnp.float32)
    return params


def fold_params(raw):
    """One-time weight-layout folding (no per-step transposes/flips in the forward)."""
    p = {}
    # plain convs: (OC,C,KH,KW) -> (OC, C*KH*KW); bias -> (OC,1)
    for name in ("e1", "e2", "e3"):
        w, b = raw[name + "_w"], raw[name + "_b"]
        p[name + "_w"] = w.reshape(w.shape[0], -1)
        p[name + "_b"] = b.reshape(-1, 1)
    # ConvTranspose2d(16,16,4,4,stride=2) -> 4 packed sub-pixel 2x2 kernels.
    # Y[oc,2u+p,2v+q] = sum_{c,a,b} Xpad[c,u+a,v+b] * W[c,oc,p+2-2a,q+2-2b]
    w = raw["d1_w"]                                    # (IC, OC, 4, 4)
    IC, OC = w.shape[0], w.shape[1]
    k = jnp.zeros((2, 2, OC, IC, 2, 2), w.dtype)
    for ph in range(2):
        for qh in range(2):
            for a in range(2):
                for bb in range(2):
                    k = k.at[ph, qh, :, :, a, bb].set(
                        w[:, :, ph + 2 - 2 * a, qh + 2 - 2 * bb].T)
    p["d1_w"] = k.reshape(4 * OC, IC * 4)
    p["d1_b"] = jnp.tile(raw["d1_b"], 4).reshape(4 * OC, 1)
    # ConvTranspose2d(16,1,2,2,stride=2) -> 4 per-phase 1x1 convs:
    # Y[oc,2u+p,2v+q] = sum_c X[c,u,v] * W[c,oc,p,q]
    w = raw["d2_w"]                                    # (IC, OC, 2, 2)
    IC, OC = w.shape[0], w.shape[1]
    p["d2_w"] = jnp.transpose(w, (2, 3, 1, 0)).reshape(4 * OC, IC)
    p["d2_b"] = jnp.tile(raw["d2_b"], 4).reshape(4 * OC, 1)
    # bloc convs fused with 2x2 max-pool: embed the 4 phase kernels inside a
    # (KH+1)x(KW+1) window, packed along rows -> (4*OCp, C*(KH+1)*(KW+1)).
    # OC is padded to a multiple of 8 so the in-kernel row-group max slices are
    # sublane-aligned; padded channels are all-zero and dropped after the kernel.
    for name in ("b1", "b2"):
        w, b = raw[name + "_w"], raw[name + "_b"]
        OC, C, KH, KW = w.shape
        OCp = _round_up(OC, 8)
        k = jnp.zeros((2, 2, OCp, C, KH + 1, KW + 1), w.dtype)
        for ph in range(2):
            for qh in range(2):
                k = k.at[ph, qh, :OC, :, ph:ph + KH, qh:qh + KW].set(w)
        p[name + "_w"] = k.reshape(4 * OCp, C * (KH + 1) * (KW + 1))
        p[name + "_b"] = jnp.zeros((OCp,), w.dtype).at[:OC].set(b).reshape(-1, 1)
    # classifier Linears: torch (out,in) -> (in,out); bias -> (1,out)
    for name in ("c1", "c2", "c3"):
        p[name + "_w"] = raw[name + "_w"].T
        p[name + "_b"] = raw[name + "_b"].reshape(1, -1)
    return p


# ----------------------------------------------------------------------------
# Forward pass (mirrors Rnumber.forward)
# ----------------------------------------------------------------------------
def rnumber_forward(fp, x):
    """x: (B, 1, 14, 14) NCHW float32. Returns (B, 10) logits."""
    B = x.shape[0]
    h = jnp.transpose(x, (1, 0, 2, 3))                               # (C, B, H, W)
    # encoder
    h = conv2d(h, fp["e1_w"], fp["e1_b"], kh=3, kw=3, relu=True)     # (32,B,12,12)
    h = conv2d(h, fp["e2_w"], fp["e2_b"], kh=4, kw=4, relu=True)     # (16,B, 9, 9)
    h = conv2d(h, fp["e3_w"], fp["e3_b"], kh=4, kw=4, relu=False)    # (16,B, 6, 6)
    # decoder (sub-pixel ConvTranspose, no zero-insert)
    h = conv_transpose2d_s2(h, fp["d1_w"], fp["d1_b"], sub_k=2, relu=True)   # (16,B,14,14)
    h = conv_transpose2d_s2(h, fp["d2_w"], fp["d2_b"], sub_k=1, relu=False)  # ( 1,B,28,28)
    # bloc (Conv + ReLU + MaxPool fused into one kernel each)
    h = conv2d_relu_maxpool(h, fp["b1_w"], fp["b1_b"], kh=5, kw=5, oc=6)     # ( 6,B,12,12)
    h = conv2d_relu_maxpool(h, fp["b2_w"], fp["b2_b"], kh=5, kw=5, oc=16)    # (16,B, 4, 4)
    # flatten in torch NCHW order -> (B, 256)
    h = jnp.transpose(h, (1, 0, 2, 3)).reshape(B, -1)
    # fused 3-layer classifier
    return _mlp3(h, fp["c1_w"], fp["c1_b"], fp["c2_w"], fp["c2_b"],
                 fp["c3_w"], fp["c3_b"])


# ----------------------------------------------------------------------------
# Pure-XLA reference (PyTorch semantics) for a loose numerical sanity check
# ----------------------------------------------------------------------------
def _conv_ref(x, w, b):
    y = lax.conv_general_dilated(x, w, (1, 1), 'VALID',
                                 dimension_numbers=('NCHW', 'OIHW', 'NCHW'))
    return y + b.reshape(1, -1, 1, 1)


def _convT_ref(x, w, b, stride):
    kh, kw = w.shape[2], w.shape[3]
    wf = jnp.flip(w, (2, 3)).transpose(1, 0, 2, 3)      # (OC, IC, KH, KW)
    y = lax.conv_general_dilated(
        x, wf, window_strides=(1, 1),
        padding=((kh - 1, kh - 1), (kw - 1, kw - 1)),
        lhs_dilation=(stride, stride),
        dimension_numbers=('NCHW', 'OIHW', 'NCHW'))
    return y + b.reshape(1, -1, 1, 1)


def _pool_ref(x):
    return lax.reduce_window(x, -jnp.inf, lax.max, (1, 1, 2, 2), (1, 1, 2, 2), 'VALID')


def rnumber_reference(raw, x):
    r = jnp.maximum
    h = r(_conv_ref(x, raw["e1_w"], raw["e1_b"]), 0.0)
    h = r(_conv_ref(h, raw["e2_w"], raw["e2_b"]), 0.0)
    h = _conv_ref(h, raw["e3_w"], raw["e3_b"])
    h = r(_convT_ref(h, raw["d1_w"], raw["d1_b"], 2), 0.0)
    h = _convT_ref(h, raw["d2_w"], raw["d2_b"], 2)
    h = _pool_ref(r(_conv_ref(h, raw["b1_w"], raw["b1_b"]), 0.0))
    h = _pool_ref(r(_conv_ref(h, raw["b2_w"], raw["b2_b"]), 0.0))
    h = h.reshape(x.shape[0], -1)
    h = r(h @ raw["c1_w"].T + raw["c1_b"], 0.0)
    h = r(h @ raw["c2_w"].T + raw["c2_b"], 0.0)
    return h @ raw["c3_w"].T + raw["c3_b"]


if __name__ == "__main__":
    key = jax.random.PRNGKey(0)
    pkey, xkey = jax.random.split(key)
    raw = init_params(pkey)
    params = fold_params(raw)                 # one-time layout folding
    # input must be 14x14 so bloc output flattens to 256 features
    x = jax.random.normal(xkey, (2, 1, 14, 14), dtype=jnp.float32)

    fwd = jax.jit(rnumber_forward)
    out = jax.block_until_ready(fwd(params, x))
    assert out.shape == (2, 10), out.shape
    assert out.dtype == jnp.float32

    # loose sanity check vs. a pure-XLA reference (catches layout/index bugs;
    # tolerance allows for MXU vs XLA f32 matmul pass differences)
    ref = jax.block_until_ready(jax.jit(rnumber_reference)(raw, x))
    rel = float(jnp.max(jnp.abs(out - ref)) / (jnp.max(jnp.abs(ref)) + 1e-12))
    assert rel < 0.1, f"mismatch vs reference: rel={rel}"

    print("KERNEL_OK")
</pallas_src>

<mosaic_0001>
module attributes {stable_mosaic.version = 11 : i64} {
  func.func @kernel(%arg0: i32, %arg1: memref<32x9xf32, #tpu.memory_space<vmem>>, %arg2: memref<9x384xf32, #tpu.memory_space<vmem>>, %arg3: memref<32x1xf32, #tpu.memory_space<vmem>>, %arg4: memref<32x384xf32, #tpu.memory_space<vmem>>) attributes {dimension_semantics = [#tpu.dimension_semantics<parallel>], iteration_bounds = array<i64: 1>, scalar_prefetch = 0 : i64, scratch_operands = 0 : i64, tpu.core_type = #tpu.core_type<tc>, window_params = [{pipeline_mode = #tpu.pipeline_mode<synchronous>, transform_indices = @transform_0, window_bounds = array<i64: 32, 9>}, {transform_indices = @transform_1, window_bounds = array<i64: 9, 384>}, {pipeline_mode = #tpu.pipeline_mode<synchronous>, transform_indices = @transform_2, window_bounds = array<i64: 32, 1>}, {transform_indices = @transform_3, window_bounds = array<i64: 32, 384>}]} {
    %c0 = arith.constant 0 : index
    %c0_0 = arith.constant 0 : index
    %0 = vector.load %arg1[%c0, %c0_0] : memref<32x9xf32, #tpu.memory_space<vmem>>, vector<32x9xf32>
    %c0_1 = arith.constant 0 : index
    %c0_2 = arith.constant 0 : index
    %1 = vector.load %arg2[%c0_1, %c0_2] : memref<9x384xf32, #tpu.memory_space<vmem>>, vector<9x384xf32>
    %cst = arith.constant dense<0.000000e+00> : vector<32x384xf32>
    %2 = tpu.matmul %0, %1, %cst {dimension_numbers = #tpu.dot_dimension_numbers<[1], [0], [0], [1], [0, 0, 1, 1], [], []>} : vector<32x9xf32>, vector<9x384xf32>, vector<32x384xf32> -> vector<32x384xf32>
    %c0_3 = arith.constant 0 : index
    %c0_4 = arith.constant 0 : index
    %3 = vector.load %arg3[%c0_3, %c0_4] : memref<32x1xf32, #tpu.memory_space<vmem>>, vector<32x1xf32>
    %4 = vector.broadcast %3 : vector<32x1xf32> to vector<32x384xf32>
    %5 = arith.addf %2, %4 : vector<32x384xf32>
    %cst_5 = arith.constant 0.000000e+00 : f32
    %6 = vector.broadcast %cst_5 : f32 to vector<32x384xf32>
    %7 = arith.maximumf %5, %6 : vector<32x384xf32>
    %c0_6 = arith.constant 0 : index
    %c0_7 = arith.constant 0 : index
    %8 = vector.load %arg4[%c0_6, %c0_7] : memref<32x384xf32, #tpu.memory_space<vmem>>, vector<32x384xf32>
    tpu.vector_store %arg4[%c0_6, %c0_7], %7 {strides = array<i32>} : memref<32x384xf32, #tpu.memory_space<vmem>>, vector<32x384xf32>,
    return
  }
  func.func @transform_0(%arg0: i32) -> (i32, i32) {
    %c0_i32 = arith.constant 0 : i32
    %c0_i32_0 = arith.constant 0 : i32
    %c0_i32_1 = arith.constant 0 : i32
    return %c0_i32, %c0_i32_0 : i32, i32
  }
  func.func @transform_1(%arg0: i32) -> (i32, i32) {
    %c0_i32 = arith.constant 0 : i32
    %c0_i32_0 = arith.constant 0 : i32
    return %c0_i32, %arg0 : i32, i32
  }
  func.func @transform_2(%arg0: i32) -> (i32, i32) {
    %c0_i32 = arith.constant 0 : i32
    %c0_i32_0 = arith.constant 0 : i32
    %c0_i32_1 = arith.constant 0 : i32
    return %c0_i32, %c0_i32_0 : i32, i32
  }
  func.func @transform_3(%arg0: i32) -> (i32, i32) {
    %c0_i32 = arith.constant 0 : i32
    %c0_i32_0 = arith.constant 0 : i32
    return %c0_i32, %arg0 : i32, i32
  }
}

module attributes {stable_mosaic.version = 11 : i64} {
  func.func @kernel(%arg0: i32, %arg1: memref<16x512xf32, #tpu.memory_space<vmem>>, %arg2: memref<512x256xf32, #tpu.memory_space<vmem>>, %arg3: memref<16x1xf32, #tpu.memory_space<vmem>>, %arg4: memref<16x256xf32, #tpu.memory_space<vmem>>) attributes {dimension_semantics = [#tpu.dimension_semantics<parallel>], iteration_bounds = array<i64: 1>, scalar_prefetch = 0 : i64, scratch_operands = 0 : i64, tpu.core_type = #tpu.core_type<tc>, window_params = [{pipeline_mode = #tpu.pipeline_mode<synchronous>, transform_indices = @transform_0, window_bounds = array<i64: 16, 512>}, {transform_indices = @transform_1, window_bounds = array<i64: 512, 256>}, {pipeline_mode = #tpu.pipeline_mode<synchronous>, transform_indices = @transform_2, window_bounds = array<i64: 16, 1>}, {transform_indices = @transform_3, window_bounds = array<i64: 16, 256>}]} {
    %c0 = arith.constant 0 : index
    %c0_0 = arith.constant 0 : index
    %0 = vector.load %arg1[%c0, %c0_0] : memref<16x512xf32, #tpu.memory_space<vmem>>, vector<16x512xf32>
    %c0_1 = arith.constant 0 : index
    %c0_2 = arith.constant 0 : index
    %1 = vector.load %arg2[%c0_1, %c0_2] : memref<512x256xf32, #tpu.memory_space<vmem>>, vector<512x256xf32>
    %cst = arith.constant dense<0.000000e+00> : vector<16x256xf32>
    %2 = tpu.matmul %0, %1, %cst {dimension_numbers = #tpu.dot_dimension_numbers<[1], [0], [0], [1], [0, 0, 1, 1], [], []>} : vector<16x512xf32>, vector<512x256xf32>, vector<16x256xf32> -> vector<16x256xf32>
    %c0_3 = arith.constant 0 : index
    %c0_4 = arith.constant 0 : index
    %3 = vector.load %arg3[%c0_3, %c0_4] : memref<16x1xf32, #tpu.memory_space<vmem>>, vector<16x1xf32>
    %4 = vector.broadcast %3 : vector<16x1xf32> to vector<16x256xf32>
    %5 = arith.addf %2, %4 : vector<16x256xf32>
    %cst_5 = arith.constant 0.000000e+00 : f32
    %6 = vector.broadcast %cst_5 : f32 to vector<16x256xf32>
    %7 = arith.maximumf %5, %6 : vector<16x256xf32>
    %c0_6 = arith.constant 0 : index
    %c0_7 = arith.constant 0 : index
    %8 = vector.load %arg4[%c0_6, %c0_7] : memref<16x256xf32, #tpu.memory_space<vmem>>, vector<16x256xf32>
    tpu.vector_store %arg4[%c0_6, %c0_7], %7 {strides = array<i32>} : memref<16x256xf32, #tpu.memory_space<vmem>>, vector<16x256xf32>,
    return
  }
  func.func @transform_0(%arg0: i32) -> (i32, i32) {
    %c0_i32 = arith.constant 0 : i32
    %c0_i32_0 = arith.constant 0 : i32
    %c0_i32_1 = arith.constant 0 : i32
    return %c0_i32, %c0_i32_0 : i32, i32
  }
  func.func @transform_1(%arg0: i32) -> (i32, i32) {
    %c0_i32 = arith.constant 0 : i32
    %c0_i32_0 = arith.constant 0 : i32
    return %c0_i32, %arg0 : i32, i32
  }
  func.func @transform_2(%arg0: i32) -> (i32, i32) {
    %c0_i32 = arith.constant 0 : i32
    %c0_i32_0 = arith.constant 0 : i32
    %c0_i32_1 = arith.constant 0 : i32
    return %c0_i32, %c0_i32_0 : i32, i32
  }
  func.func @transform_3(%arg0: i32) -> (i32, i32) {
    %c0_i32 = arith.constant 0 : i32
    %c0_i32_0 = arith.constant 0 : i32
    return %c0_i32, %arg0 : i32, i32
  }
}

module attributes {stable_mosaic.version = 11 : i64} {
  func.func @kernel(%arg0: i32, %arg1: memref<16x256xf32, #tpu.memory_space<vmem>>, %arg2: memref<256x128xf32, #tpu.memory_space<vmem>>, %arg3: memref<16x1xf32, #tpu.memory_space<vmem>>, %arg4: memref<16x128xf32, #tpu.memory_space<vmem>>) attributes {dimension_semantics = [#tpu.dimension_semantics<parallel>], iteration_bounds = array<i64: 1>, scalar_prefetch = 0 : i64, scratch_operands = 0 : i64, tpu.core_type = #tpu.core_type<tc>, window_params = [{pipeline_mode = #tpu.pipeline_mode<synchronous>, transform_indices = @transform_0, window_bounds = array<i64: 16, 256>}, {transform_indices = @transform_1, window_bounds = array<i64: 256, 128>}, {pipeline_mode = #tpu.pipeline_mode<synchronous>, transform_indices = @transform_2, window_bounds = array<i64: 16, 1>}, {transform_indices = @transform_3, window_bounds = array<i64: 16, 128>}]} {
    %c0 = arith.constant 0 : index
    %c0_0 = arith.constant 0 : index
    %0 = vector.load %arg1[%c0, %c0_0] : memref<16x256xf32, #tpu.memory_space<vmem>>, vector<16x256xf32>
    %c0_1 = arith.constant 0 : index
    %c0_2 = arith.constant 0 : index
    %1 = vector.load %arg2[%c0_1, %c0_2] : memref<256x128xf32, #tpu.memory_space<vmem>>, vector<256x128xf32>
    %cst = arith.constant dense<0.000000e+00> : vector<16x128xf32>
    %2 = tpu.matmul %0, %1, %cst {dimension_numbers = #tpu.dot_dimension_numbers<[1], [0], [0], [1], [0, 0, 1, 1], [], []>} : vector<16x256xf32>, vector<256x128xf32>, vector<16x128xf32> -> vector<16x128xf32>
    %c0_3 = arith.constant 0 : index
    %c0_4 = arith.constant 0 : index
    %3 = vector.load %arg3[%c0_3, %c0_4] : memref<16x1xf32, #tpu.memory_space<vmem>>, vector<16x1xf32>
    %4 = vector.broadcast %3 : vector<16x1xf32> to vector<16x128xf32>
    %5 = arith.addf %2, %4 : vector<16x128xf32>
    %c0_5 = arith.constant 0 : index
    %c0_6 = arith.constant 0 : index
    %6 = vector.load %arg4[%c0_5, %c0_6] : memref<16x128xf32, #tpu.memory_space<vmem>>, vector<16x128xf32>
    tpu.vector_store %arg4[%c0_5, %c0_6], %5 {strides = array<i32>} : memref<16x128xf32, #tpu.memory_space<vmem>>, vector<16x128xf32>,
    return
  }
  func.func @transform_0(%arg0: i32) -> (i32, i32) {
    %c0_i32 = arith.constant 0 : i32
    %c0_i32_0 = arith.constant 0 : i32
    %c0_i32_1 = arith.constant 0 : i32
    return %c0_i32, %c0_i32_0 : i32, i32
  }
  func.func @transform_1(%arg0: i32) -> (i32, i32) {
    %c0_i32 = arith.constant 0 : i32
    %c0_i32_0 = arith.constant 0 : i32
    return %c0_i32, %arg0 : i32, i32
  }
  func.func @transform_2(%arg0: i32) -> (i32, i32) {
    %c0_i32 = arith.constant 0 : i32
    %c0_i32_0 = arith.constant 0 : i32
    %c0_i32_1 = arith.constant 0 : i32
    return %c0_i32, %c0_i32_0 : i32, i32
  }
  func.func @transform_3(%arg0: i32) -> (i32, i32) {
    %c0_i32 = arith.constant 0 : i32
    %c0_i32_0 = arith.constant 0 : i32
    return %c0_i32, %arg0 : i32, i32
  }
}

module attributes {stable_mosaic.version = 11 : i64} {
  func.func @kernel(%arg0: i32, %arg1: memref<64x64xf32, #tpu.memory_space<vmem>>, %arg2: memref<64x128xf32, #tpu.memory_space<vmem>>, %arg3: memref<64x1xf32, #tpu.memory_space<vmem>>, %arg4: memref<64x128xf32, #tpu.memory_space<vmem>>) attributes {dimension_semantics = [#tpu.dimension_semantics<parallel>], iteration_bounds = array<i64: 1>, scalar_prefetch = 0 : i64, scratch_operands = 0 : i64, tpu.core_type = #tpu.core_type<tc>, window_params = [{pipeline_mode = #tpu.pipeline_mode<synchronous>, transform_indices = @transform_0, window_bounds = array<i64: 64, 64>}, {transform_indices = @transform_1, window_bounds = array<i64: 64, 128>}, {pipeline_mode = #tpu.pipeline_mode<synchronous>, transform_indices = @transform_2, window_bounds = array<i64: 64, 1>}, {transform_indices = @transform_3, window_bounds = array<i64: 64, 128>}]} {
    %c0 = arith.constant 0 : index
    %c0_0 = arith.constant 0 : index
    %0 = vector.load %arg1[%c0, %c0_0] : memref<64x64xf32, #tpu.memory_space<vmem>>, vector<64x64xf32>
    %c0_1 = arith.constant 0 : index
    %c0_2 = arith.constant 0 : index
    %1 = vector.load %arg2[%c0_1, %c0_2] : memref<64x128xf32, #tpu.memory_space<vmem>>, vector<64x128xf32>
    %cst = arith.constant dense<0.000000e+00> : vector<64x128xf32>
    %2 = tpu.matmul %0, %1, %cst {dimension_numbers = #tpu.dot_dimension_numbers<[1], [0], [0], [1], [0, 0, 1, 1], [], []>} : vector<64x64xf32>, vector<64x128xf32>, vector<64x128xf32> -> vector<64x128xf32>
    %c0_3 = arith.constant 0 : index
    %c0_4 = arith.constant 0 : index
    %3 = vector.load %arg3[%c0_3, %c0_4] : memref<64x1xf32, #tpu.memory_space<vmem>>, vector<64x1xf32>
    %4 = vector.broadcast %3 : vector<64x1xf32> to vector<64x128xf32>
    %5 = arith.addf %2, %4 : vector<64x128xf32>
    %cst_5 = arith.constant 0.000000e+00 : f32
    %6 = vector.broadcast %cst_5 : f32 to vector<64x128xf32>
    %7 = arith.maximumf %5, %6 : vector<64x128xf32>
    %c0_6 = arith.constant 0 : index
    %c0_7 = arith.constant 0 : index
    %8 = vector.load %arg4[%c0_6, %c0_7] : memref<64x128xf32, #tpu.memory_space<vmem>>, vector<64x128xf32>
    tpu.vector_store %arg4[%c0_6, %c0_7], %7 {strides = array<i32>} : memref<64x128xf32, #tpu.memory_space<vmem>>, vector<64x128xf32>,
    return
  }
  func.func @transform_0(%arg0: i32) -> (i32, i32) {
    %c0_i32 = arith.constant 0 : i32
    %c0_i32_0 = arith.constant 0 : i32
    %c0_i32_1 = arith.constant 0 : i32
    return %c0_i32, %c0_i32_0 : i32, i32
  }
  func.func @transform_1(%arg0: i32) -> (i32, i32) {
    %c0_i32 = arith.constant 0 : i32
    %c0_i32_0 = arith.constant 0 : i32
    return %c0_i32, %arg0 : i32, i32
  }
  func.func @transform_2(%arg0: i32) -> (i32, i32) {
    %c0_i32 = arith.constant 0 : i32
    %c0_i32_0 = arith.constant 0 : i32
    %c0_i32_1 = arith.constant 0 : i32
    return %c0_i32, %c0_i32_0 : i32, i32
  }
  func.func @transform_3(%arg0: i32) -> (i32, i32) {
    %c0_i32 = arith.constant 0 : i32
    %c0_i32_0 = arith.constant 0 : i32
    return %c0_i32, %arg0 : i32, i32
  }
}

module attributes {stable_mosaic.version = 11 : i64} {
  func.func @kernel(%arg0: i32, %arg1: memref<4x16xf32, #tpu.memory_space<vmem>>, %arg2: memref<16x256xf32, #tpu.memory_space<vmem>>, %arg3: memref<4x1xf32, #tpu.memory_space<vmem>>, %arg4: memref<4x256xf32, #tpu.memory_space<vmem>>) attributes {dimension_semantics = [#tpu.dimension_semantics<parallel>], iteration_bounds = array<i64: 2>, scalar_prefetch = 0 : i64, scratch_operands = 0 : i64, tpu.core_type = #tpu.core_type<tc>, window_params = [{pipeline_mode = #tpu.pipeline_mode<synchronous>, transform_indices = @transform_0, window_bounds = array<i64: 4, 16>}, {transform_indices = @transform_1, window_bounds = array<i64: 16, 256>}, {pipeline_mode = #tpu.pipeline_mode<synchronous>, transform_indices = @transform_2, window_bounds = array<i64: 4, 1>}, {transform_indices = @transform_3, window_bounds = array<i64: 4, 256>}]} {
    %c0 = arith.constant 0 : index
    %c0_0 = arith.constant 0 : index
    %0 = vector.load %arg1[%c0, %c0_0] : memref<4x16xf32, #tpu.memory_space<vmem>>, vector<4x16xf32>
    %c0_1 = arith.constant 0 : index
    %c0_2 = arith.constant 0 : index
    %1 = vector.load %arg2[%c0_1, %c0_2] : memref<16x256xf32, #tpu.memory_space<vmem>>, vector<16x256xf32>
    %cst = arith.constant dense<0.000000e+00> : vector<4x256xf32>
    %2 = tpu.matmul %0, %1, %cst {dimension_numbers = #tpu.dot_dimension_numbers<[1], [0], [0], [1], [0, 0, 1, 1], [], []>} : vector<4x16xf32>, vector<16x256xf32>, vector<4x256xf32> -> vector<4x256xf32>
    %c0_3 = arith.constant 0 : index
    %c0_4 = arith.constant 0 : index
    %3 = vector.load %arg3[%c0_3, %c0_4] : memref<4x1xf32, #tpu.memory_space<vmem>>, vector<4x1xf32>
    %4 = vector.broadcast %3 : vector<4x1xf32> to vector<4x256xf32>
    %5 = arith.addf %2, %4 : vector<4x256xf32>
    %c0_5 = arith.constant 0 : index
    %c0_6 = arith.constant 0 : index
    %6 = vector.load %arg4[%c0_5, %c0_6] : memref<4x256xf32, #tpu.memory_space<vmem>>, vector<4x256xf32>
    tpu.vector_store %arg4[%c0_5, %c0_6], %5 {strides = array<i32>} : memref<4x256xf32, #tpu.memory_space<vmem>>, vector<4x256xf32>,
    return
  }
  func.func @transform_0(%arg0: i32) -> (i32, i32) {
    %c0_i32 = arith.constant 0 : i32
    %c0_i32_0 = arith.constant 0 : i32
    %c0_i32_1 = arith.constant 0 : i32
    return %c0_i32, %c0_i32_0 : i32, i32
  }
  func.func @transform_1(%arg0: i32) -> (i32, i32) {
    %c0_i32 = arith.constant 0 : i32
    %c0_i32_0 = arith.constant 0 : i32
    return %c0_i32, %arg0 : i32, i32
  }
  func.func @transform_2(%arg0: i32) -> (i32, i32) {
    %c0_i32 = arith.constant 0 : i32
    %c0_i32_0 = arith.constant 0 : i32
    %c0_i32_1 = arith.constant 0 : i32
    return %c0_i32, %c0_i32_0 : i32, i32
  }
  func.func @transform_3(%arg0: i32) -> (i32, i32) {
    %c0_i32 = arith.constant 0 : i32
    %c0_i32_0 = arith.constant 0 : i32
    return %c0_i32, %arg0 : i32, i32
  }
}

module attributes {stable_mosaic.version = 11 : i64} {
  func.func @kernel(%arg0: i32, %arg1: memref<32x36xf32, #tpu.memory_space<vmem>>, %arg2: memref<36x384xf32, #tpu.memory_space<vmem>>, %arg3: memref<8x1xf32, #tpu.memory_space<vmem>>, %arg4: memref<8x384xf32, #tpu.memory_space<vmem>>) attributes {dimension_semantics = [#tpu.dimension_semantics<parallel>], iteration_bounds = array<i64: 1>, scalar_prefetch = 0 : i64, scratch_operands = 0 : i64, tpu.core_type = #tpu.core_type<tc>, window_params = [{pipeline_mode = #tpu.pipeline_mode<synchronous>, transform_indices = @transform_0, window_bounds = array<i64: 32, 36>}, {transform_indices = @transform_1, window_bounds = array<i64: 36, 384>}, {pipeline_mode = #tpu.pipeline_mode<synchronous>, transform_indices = @transform_2, window_bounds = array<i64: 8, 1>}, {transform_indices = @transform_3, window_bounds = array<i64: 8, 384>}]} {
    %c0 = arith.constant 0 : index
    %c0_0 = arith.constant 0 : index
    %0 = vector.load %arg1[%c0, %c0_0] : memref<32x36xf32, #tpu.memory_space<vmem>>, vector<32x36xf32>
    %c0_1 = arith.constant 0 : index
    %c0_2 = arith.constant 0 : index
    %1 = vector.load %arg2[%c0_1, %c0_2] : memref<36x384xf32, #tpu.memory_space<vmem>>, vector<36x384xf32>
    %cst = arith.constant dense<0.000000e+00> : vector<32x384xf32>
    %2 = tpu.matmul %0, %1, %cst {dimension_numbers = #tpu.dot_dimension_numbers<[1], [0], [0], [1], [0, 0, 1, 1], [], []>} : vector<32x36xf32>, vector<36x384xf32>, vector<32x384xf32> -> vector<32x384xf32>
    %3 = vector.extract_strided_slice %2 {offsets = [0, 0], sizes = [8, 384], strides = [1, 1]} : vector<32x384xf32> to vector<8x384xf32>
    %4 = vector.extract_strided_slice %2 {offsets = [8, 0], sizes = [8, 384], strides = [1, 1]} : vector<32x384xf32> to vector<8x384xf32>
    %5 = arith.maximumf %3, %4 : vector<8x384xf32>
    %6 = vector.extract_strided_slice %2 {offsets = [16, 0], sizes = [8, 384], strides = [1, 1]} : vector<32x384xf32> to vector<8x384xf32>
    %7 = arith.maximumf %5, %6 : vector<8x384xf32>
    %8 = vector.extract_strided_slice %2 {offsets = [24, 0], sizes = [8, 384], strides = [1, 1]} : vector<32x384xf32> to vector<8x384xf32>
    %9 = arith.maximumf %7, %8 : vector<8x384xf32>
    %c0_3 = arith.constant 0 : index
    %c0_4 = arith.constant 0 : index
    %10 = vector.load %arg3[%c0_3, %c0_4] : memref<8x1xf32, #tpu.memory_space<vmem>>, vector<8x1xf32>
    %11 = vector.broadcast %10 : vector<8x1xf32> to vector<8x384xf32>
    %12 = arith.addf %9, %11 : vector<8x384xf32>
    %cst_5 = arith.constant 0.000000e+00 : f32
    %13 = vector.broadcast %cst_5 : f32 to vector<8x384xf32>
    %14 = arith.maximumf %12, %13 : vector<8x384xf32>
    %c0_6 = arith.constant 0 : index
    %c0_7 = arith.constant 0 : index
    %15 = vector.load %arg4[%c0_6, %c0_7] : memref<8x384xf32, #tpu.memory_space<vmem>>, vector<8x384xf32>
    tpu.vector_store %arg4[%c0_6, %c0_7], %14 {strides = array<i32>} : memref<8x384xf32, #tpu.memory_space<vmem>>, vector<8x384xf32>,
    return
  }
  func.func @transform_0(%arg0: i32) -> (i32, i32) {
    %c0_i32 = arith.constant 0 : i32
    %c0_i32_0 = arith.constant 0 : i32
    %c0_i32_1 = arith.constant 0 : i32
    return %c0_i32, %c0_i32_0 : i32, i32
  }
  func.func @transform_1(%arg0: i32) -> (i32, i32) {
    %c0_i32 = arith.constant 0 : i32
    %c0_i32_0 = arith.constant 0 : i32
    return %c0_i32, %arg0 : i32, i32
  }
  func.func @transform_2(%arg0: i32) -> (i32, i32) {
    %c0_i32 = arith.constant 0 : i32
    %c0_i32_0 = arith.constant 0 : i32
    %c0_i32_1 = arith.constant 0 : i32
    return %c0_i32, %c0_i32_0 : i32, i32
  }
  func.func @transform_3(%arg0: i32) -> (i32, i32) {
    %c0_i32 = arith.constant 0 : i32
    %c0_i32_0 = arith.constant 0 : i32
    return %c0_i32, %arg0 : i32, i32
  }
}

module attributes {stable_mosaic.version = 11 : i64} {
  func.func @kernel(%arg0: i32, %arg1: memref<64x216xf32, #tpu.memory_space<vmem>>, %arg2: memref<216x128xf32, #tpu.memory_space<vmem>>, %arg3: memref<16x1xf32, #tpu.memory_space<vmem>>, %arg4: memref<16x128xf32, #tpu.memory_space<vmem>>) attributes {dimension_semantics = [#tpu.dimension_semantics<parallel>], iteration_bounds = array<i64: 1>, scalar_prefetch = 0 : i64, scratch_operands = 0 : i64, tpu.core_type = #tpu.core_type<tc>, window_params = [{pipeline_mode = #tpu.pipeline_mode<synchronous>, transform_indices = @transform_0, window_bounds = array<i64: 64, 216>}, {transform_indices = @transform_1, window_bounds = array<i64: 216, 128>}, {pipeline_mode = #tpu.pipeline_mode<synchronous>, transform_indices = @transform_2, window_bounds = array<i64: 16, 1>}, {transform_indices = @transform_3, window_bounds = array<i64: 16, 128>}]} {
    %c0 = arith.constant 0 : index
    %c0_0 = arith.constant 0 : index
    %0 = vector.load %arg1[%c0, %c0_0] : memref<64x216xf32, #tpu.memory_space<vmem>>, vector<64x216xf32>
    %c0_1 = arith.constant 0 : index
    %c0_2 = arith.constant 0 : index
    %1 = vector.load %arg2[%c0_1, %c0_2] : memref<216x128xf32, #tpu.memory_space<vmem>>, vector<216x128xf32>
    %cst = arith.constant dense<0.000000e+00> : vector<64x128xf32>
    %2 = tpu.matmul %0, %1, %cst {dimension_numbers = #tpu.dot_dimension_numbers<[1], [0], [0], [1], [0, 0, 1, 1], [], []>} : vector<64x216xf32>, vector<216x128xf32>, vector<64x128xf32> -> vector<64x128xf32>
    %3 = vector.extract_strided_slice %2 {offsets = [0, 0], sizes = [16, 128], strides = [1, 1]} : vector<64x128xf32> to vector<16x128xf32>
    %4 = vector.extract_strided_slice %2 {offsets = [16, 0], sizes = [16, 128], strides = [1, 1]} : vector<64x128xf32> to vector<16x128xf32>
    %5 = arith.maximumf %3, %4 : vector<16x128xf32>
    %6 = vector.extract_strided_slice %2 {offsets = [32, 0], sizes = [16, 128], strides = [1, 1]} : vector<64x128xf32> to vector<16x128xf32>
    %7 = arith.maximumf %5, %6 : vector<16x128xf32>
    %8 = vector.extract_strided_slice %2 {offsets = [48, 0], sizes = [16, 128], strides = [1, 1]} : vector<64x128xf32> to vector<16x128xf32>
    %9 = arith.maximumf %7, %8 : vector<16x128xf32>
    %c0_3 = arith.constant 0 : index
    %c0_4 = arith.constant 0 : index
    %10 = vector.load %arg3[%c0_3, %c0_4] : memref<16x1xf32, #tpu.memory_space<vmem>>, vector<16x1xf32>
    %11 = vector.broadcast %10 : vector<16x1xf32> to vector<16x128xf32>
    %12 = arith.addf %9, %11 : vector<16x128xf32>
    %cst_5 = arith.constant 0.000000e+00 : f32
    %13 = vector.broadcast %cst_5 : f32 to vector<16x128xf32>
    %14 = arith.maximumf %12, %13 : vector<16x128xf32>
    %c0_6 = arith.constant 0 : index
    %c0_7 = arith.constant 0 : index
    %15 = vector.load %arg4[%c0_6, %c0_7] : memref<16x128xf32, #tpu.memory_space<vmem>>, vector<16x128xf32>
    tpu.vector_store %arg4[%c0_6, %c0_7], %14 {strides = array<i32>} : memref<16x128xf32, #tpu.memory_space<vmem>>, vector<16x128xf32>,
    return
  }
  func.func @transform_0(%arg0: i32) -> (i32, i32) {
    %c0_i32 = arith.constant 0 : i32
    %c0_i32_0 = arith.constant 0 : i32
    %c0_i32_1 = arith.constant 0 : i32
    return %c0_i32, %c0_i32_0 : i32, i32
  }
  func.func @transform_1(%arg0: i32) -> (i32, i32) {
    %c0_i32 = arith.constant 0 : i32
    %c0_i32_0 = arith.constant 0 : i32
    return %c0_i32, %arg0 : i32, i32
  }
  func.func @transform_2(%arg0: i32) -> (i32, i32) {
    %c0_i32 = arith.constant 0 : i32
    %c0_i32_0 = arith.constant 0 : i32
    %c0_i32_1 = arith.constant 0 : i32
    return %c0_i32, %c0_i32_0 : i32, i32
  }
  func.func @transform_3(%arg0: i32) -> (i32, i32) {
    %c0_i32 = arith.constant 0 : i32
    %c0_i32_0 = arith.constant 0 : i32
    return %c0_i32, %arg0 : i32, i32
  }
}

module attributes {stable_mosaic.version = 11 : i64} {
  func.func @kernel(%arg0: memref<2x256xf32, #tpu.memory_space<vmem>>, %arg1: memref<256x120xf32, #tpu.memory_space<vmem>>, %arg2: memref<1x120xf32, #tpu.memory_space<vmem>>, %arg3: memref<120x84xf32, #tpu.memory_space<vmem>>, %arg4: memref<1x84xf32, #tpu.memory_space<vmem>>, %arg5: memref<84x10xf32, #tpu.memory_space<vmem>>, %arg6: memref<1x10xf32, #tpu.memory_space<vmem>>, %arg7: memref<2x10xf32, #tpu.memory_space<vmem>>) attributes {dimension_semantics = [], scalar_prefetch = 0 : i64, scratch_operands = 0 : i64, tpu.core_type = #tpu.core_type<tc>} {
    %c0 = arith.constant 0 : index
    %c0_0 = arith.constant 0 : index
    %0 = vector.load %arg0[%c0, %c0_0] : memref<2x256xf32, #tpu.memory_space<vmem>>, vector<2x256xf32>
    %c0_1 = arith.constant 0 : index
    %c0_2 = arith.constant 0 : index
    %1 = vector.load %arg1[%c0_1, %c0_2] : memref<256x120xf32, #tpu.memory_space<vmem>>, vector<256x120xf32>
    %cst = arith.constant dense<0.000000e+00> : vector<2x120xf32>
    %2 = tpu.matmul %0, %1, %cst {dimension_numbers = #tpu.dot_dimension_numbers<[1], [0], [0], [1], [0, 0, 1, 1], [], []>} : vector<2x256xf32>, vector<256x120xf32>, vector<2x120xf32> -> vector<2x120xf32>
    %c0_3 = arith.constant 0 : index
    %c0_4 = arith.constant 0 : index
    %3 = vector.load %arg2[%c0_3, %c0_4] : memref<1x120xf32, #tpu.memory_space<vmem>>, vector<1x120xf32>
    %4 = vector.broadcast %3 : vector<1x120xf32> to vector<2x120xf32>
    %5 = arith.addf %2, %4 : vector<2x120xf32>
    %cst_5 = arith.constant 0.000000e+00 : f32
    %6 = vector.broadcast %cst_5 : f32 to vector<2x120xf32>
    %7 = arith.maximumf %5, %6 : vector<2x120xf32>
    %c0_6 = arith.constant 0 : index
    %c0_7 = arith.constant 0 : index
    %8 = vector.load %arg3[%c0_6, %c0_7] : memref<120x84xf32, #tpu.memory_space<vmem>>, vector<120x84xf32>
    %cst_8 = arith.constant dense<0.000000e+00> : vector<2x84xf32>
    %9 = tpu.matmul %7, %8, %cst_8 {dimension_numbers = #tpu.dot_dimension_numbers<[1], [0], [0], [1], [0, 0, 1, 1], [], []>} : vector<2x120xf32>, vector<120x84xf32>, vector<2x84xf32> -> vector<2x84xf32>
    %c0_9 = arith.constant 0 : index
    %c0_10 = arith.constant 0 : index
    %10 = vector.load %arg4[%c0_9, %c0_10] : memref<1x84xf32, #tpu.memory_space<vmem>>, vector<1x84xf32>
    %11 = vector.broadcast %10 : vector<1x84xf32> to vector<2x84xf32>
    %12 = arith.addf %9, %11 : vector<2x84xf32>
    %cst_11 = arith.constant 0.000000e+00 : f32
    %13 = vector.broadcast %cst_11 : f32 to vector<2x84xf32>
    %14 = arith.maximumf %12, %13 : vector<2x84xf32>
    %c0_12 = arith.constant 0 : index
    %c0_13 = arith.constant 0 : index
    %15 = vector.load %arg5[%c0_12, %c0_13] : memref<84x10xf32, #tpu.memory_space<vmem>>, vector<84x10xf32>
    %cst_14 = arith.constant dense<0.000000e+00> : vector<2x10xf32>
    %16 = tpu.matmul %14, %15, %cst_14 {dimension_numbers = #tpu.dot_dimension_numbers<[1], [0], [0], [1], [0, 0, 1, 1], [], []>} : vector<2x84xf32>, vector<84x10xf32>, vector<2x10xf32> -> vector<2x10xf32>
    %c0_15 = arith.constant 0 : index
    %c0_16 = arith.constant 0 : index
    %17 = vector.load %arg6[%c0_15, %c0_16] : memref<1x10xf32, #tpu.memory_space<vmem>>, vector<1x10xf32>
    %18 = vector.broadcast %17 : vector<1x10xf32> to vector<2x10xf32>
    %19 = arith.addf %16, %18 : vector<2x10xf32>
    %c0_17 = arith.constant 0 : index
    %c0_18 = arith.constant 0 : index
    %20 = vector.load %arg7[%c0_17, %c0_18] : memref<2x10xf32, #tpu.memory_space<vmem>>, vector<2x10xf32>
    tpu.vector_store %arg7[%c0_17, %c0_18], %19 {strides = array<i32>} : memref<2x10xf32, #tpu.memory_space<vmem>>, vector<2x10xf32>,
    return
  }
}

</mosaic_0001>

<llo_original>
// kernel: rnumber_forward.8
$region0: #{rnumber_forward.8}
  #allocation0 [shape = 'u32[]', space=smem, size = 0x4, offset = 0x4, fixed_abs, tag = 'smem constant byte address 0x4 - core index']
  #allocation1 [shape = 'u32[144,128]{1,0:T(1,128)}', space=vmem, size = 0x12000, scoped, tag = 'internal scratch']
  %s0 = inlined_call_operand.vmem [shape: f32[32,9], index: 0, kind: input, shape index: {}]
  %s1 = inlined_call_operand.vmem [shape: f32[9,384], index: 1, kind: input, shape index: {}]
  %s2 = inlined_call_operand.vmem [shape: f32[32,1], index: 2, kind: input, shape index: {}]
  %s3 = inlined_call_operand.vmem [shape: f32[32,384], index: 3, kind: output, shape index: {}]
  %s4 = sld [smem:[#allocation0]]
  $region22: #{rnumber_forward.8} parent=0
    _
  %s6 = ssub.s32 1, %s4
  %s7 = scalar_select 0, %s6, %s4
  // Predicated region
  $region2: #{rnumber_forward.8} parent=0 // pred_check
    _
  $region3: #{rnumber_forward.8} parent=0 // pred_check_branch
    %9 = sbr.rel (0) target = $region5
  $region4: #{rnumber_forward.8} parent=0 // pred_region
    _
  $region5: #{rnumber_forward.8} parent=0 // pred_fallthru
    _
  // Predicated region
  $region6: #{rnumber_forward.8} parent=0 // pred_check
    _
  $region7: #{rnumber_forward.8} parent=0 // pred_check_branch
    %11 = sbr.rel (0) target = $region9
  $region8: #{rnumber_forward.8} parent=0 // pred_region
    _
  $region9: #{rnumber_forward.8} parent=0 // pred_fallthru
    _
  // Predicated region
  $region10: #{rnumber_forward.8} parent=0 // pred_check
    _
  $region11: #{rnumber_forward.8} parent=0 // pred_check_branch
    %13 = sbr.rel (0) target = $region13
  $region12: #{rnumber_forward.8} parent=0 // pred_region
    _
  $region13: #{rnumber_forward.8} parent=0 // pred_fallthru
    _
  %v14 = vld [vmem:[%s0] sm:$0xff]
  %v15 = vld [vmem:[%s0 + $0x8] sm:$0xff]
  %v16 = vld [vmem:[%s0 + $0x10] sm:$0xff]
  %v17 = vld [vmem:[%s0 + $0x18] sm:$0xff]
  %v18 = vld [vmem:[%s1] sm:$0xff]
  %v19 = vld [vmem:[%s1 + $0x8] sm:$0xff]
  %v20 = vld [vmem:[%s1 + $0x10] sm:$0xff]
  %v21 = vld [vmem:[%s1 + $0x18] sm:$0x1]
  %v22 = vld [vmem:[%s1 + $0x20] sm:$0x1]
  %v23 = vld [vmem:[%s1 + $0x28] sm:$0x1]
  %v24 = vld [vmem:[%s2] sm:$0xff]
  %v25 = vld [vmem:[%s2 + $0x8] sm:$0xff]
  %v26 = vld [vmem:[%s2 + $0x10] sm:$0xff]
  %v27 = vld [vmem:[%s2 + $0x18] sm:$0xff]
  %29 = vset.pattern.permute.xlu0 0
  %30 = vperm.xlu0 %29, %v24
  %v31 = vpop.permute.xlu0 %30
  %34 = vset.pattern.permute.xlu0 0
  %35 = vperm.xlu0 %34, %v25
  %v36 = vpop.permute.xlu0 %35
  %39 = vset.pattern.permute.xlu0 0
  %40 = vperm.xlu0 %39, %v26
  %v41 = vpop.permute.xlu0 %40
  %44 = vset.pattern.permute.xlu0 0
  %45 = vperm.xlu0 %44, %v27
  %v46 = vpop.permute.xlu0 %45
  %vm48 = vcmask 72704
  %v50 = vsel %vm48, %v14, 0
  %v53 = vsel %vm48, %v15, 0
  %v56 = vsel %vm48, %v16, 0
  %v59 = vsel %vm48, %v17, 0
  %vm61 = vcmask 1040384
  %v63 = vsel %vm61, %v21, 0
  %v66 = vsel %vm61, %v22, 0
  %v69 = vsel %vm61, %v23, 0
  %71 = vmatprep.subr.mxu0 0.0
  %72 = vmatpush1.msra.mxu0 0.0
  %73 = vmatprep.subr.mxu0 0.0
  %74 = vmatpush1.msra.mxu0 0.0
  %75 = vmatprep.subr.mxu0 0.0
  %76 = vmatpush1.msra.mxu0 0.0
  %77 = vmatprep.subr.mxu0 0.0
  %78 = vmatpush1.msra.mxu0 0.0
  %79 = vmatprep.subr.mxu0 0.0
  %80 = vmatpush1.msra.mxu0 0.0
  %81 = vmatprep.subr.mxu0 0.0
  %82 = vmatpush1.msra.mxu0 0.0
  %83 = vmatprep.subr.mxu0 0.0
  %84 = vmatpush1.msra.mxu0 0.0
  %85 = vmatprep.subr.mxu0 0.0
  %86 = vmatpush1.msra.mxu0 0.0
  %87 = vmatprep.subr.mxu0 0.0
  %88 = vmatpush1.msra.mxu0 0.0
  %89 = vmatprep.subr.mxu0 0.0
  %90 = vmatpush1.msra.mxu0 0.0
  %91 = vmatprep.subr.mxu0 0.0
  %92 = vmatpush1.msra.mxu0 0.0
  %93 = vmatprep.subr.mxu0 0.0
  %94 = vmatpush1.msra.mxu0 0.0
  %95 = vmatprep.subr.mxu0 0.0
  %96 = vmatpush1.msra.mxu0 0.0
  %97 = vmatprep.subr.mxu0 0.0
  %98 = vmatpush1.msra.mxu0 0.0
  %99 = vmatprep.subr.mxu0 %v66
  %100 = vmatpush1.msra.mxu0 %v63
  %101 = vmatprep.subr.mxu0 %v19
  %102 = vmatpush1.msra.mxu0 %v18
  %103 = vmatprep.subr.mxu0 0.0
  %104 = vmatpush2.msra.mxu0 0.0
  %105 = vmatprep.subr.mxu0 0.0
  %106 = vmatpush2.msra.mxu0 0.0
  %107 = vmatprep.subr.mxu0 0.0
  %108 = vmatpush2.msra.mxu0 0.0
  %109 = vmatprep.subr.mxu0 0.0
  %110 = vmatpush2.msra.mxu0 0.0
  %111 = vmatprep.subr.mxu0 0.0
  %112 = vmatpush2.msra.mxu0 0.0
  %113 = vmatprep.subr.mxu0 0.0
  %114 = vmatpush2.msra.mxu0 0.0
  %115 = vmatprep.subr.mxu0 0.0
  %116 = vmatpush2.msra.mxu0 0.0
  %117 = vmatprep.subr.mxu0 0.0
  %118 = vmatpush2.msra.mxu0 0.0
  %119 = vmatprep.subr.mxu0 0.0
  %120 = vmatpush2.msra.mxu0 0.0
  %121 = vmatprep.subr.mxu0 0.0
  %122 = vmatpush2.msra.mxu0 0.0
  %123 = vmatprep.subr.mxu0 0.0
  %124 = vmatpush2.msra.mxu0 0.0
  %125 = vmatprep.subr.mxu0 0.0
  %126 = vmatpush2.msra.mxu0 0.0
  %127 = vmatprep.subr.mxu0 0.0
  %128 = vmatpush2.msra.mxu0 0.0
  %129 = vmatprep.subr.mxu0 0.0
  %130 = vmatpush2.msra.mxu0 0.0
  %131 = vmatprep.subr.mxu0 0.0
  %132 = vmatpush2.msra.mxu0 0.0
  %133 = vmatprep.subr.mxu0 0.0
  %134 = vmatpush2.msra.mxu0 0.0
  %135 = vmatprep.mubr.f32.mxu0 0.0
  %136 = vmatmul.mubr.f32.gmra.mxu0 %v50
  %v137 = vpop.f32.mrf.mxu0
  %v138 = vadd.f32 %v31, %v137
  %v139 = vpop.f32.mrf.mxu0
  %v140 = vadd.f32 %v31, %v139
  %141 = vmatprep.mubr.f32.mxu0 0.0
  %142 = vmatmul.mubr.f32.gmra.mxu0 %v53
  %v143 = vpop.f32.mrf.mxu0
  %v144 = vadd.f32 %v36, %v143
  %v145 = vpop.f32.mrf.mxu0
  %v146 = vadd.f32 %v36, %v145
  %147 = vmatprep.mubr.f32.mxu0 0.0
  %148 = vmatmul.mubr.f32.gmra.mxu0 %v56
  %v149 = vpop.f32.mrf.mxu0
  %v150 = vadd.f32 %v41, %v149
  %v151 = vpop.f32.mrf.mxu0
  %v152 = vadd.f32 %v41, %v151
  %153 = vmatprep.mubr.f32.mxu0 0.0
  %154 = vmatmul.mubr.f32.gmra.mxu0 %v59
  %v155 = vpop.f32.mrf.mxu0
  %v156 = vadd.f32 %v46, %v155
  %v157 = vpop.f32.mrf.mxu0
  %v158 = vadd.f32 %v46, %v157
  %159 = vdwg.mxu0
  %160 = vmatprep.subr.mxu0 0.0
  %161 = vmatpush1.msra.mxu0 0.0
  %162 = vmatprep.subr.mxu0 0.0
  %163 = vmatpush1.msra.mxu0 0.0
  %164 = vmatprep.subr.mxu0 0.0
  %165 = vmatpush1.msra.mxu0 0.0
  %166 = vmatprep.subr.mxu0 0.0
  %167 = vmatpush1.msra.mxu0 0.0
  %168 = vmatprep.subr.mxu0 0.0
  %169 = vmatpush1.msra.mxu0 0.0
  %170 = vmatprep.subr.mxu0 0.0
  %171 = vmatpush1.msra.mxu0 0.0
  %172 = vmatprep.subr.mxu0 0.0
  %173 = vmatpush1.msra.mxu0 0.0
  %174 = vmatprep.subr.mxu0 0.0
  %175 = vmatpush1.msra.mxu0 0.0
  %176 = vmatprep.subr.mxu0 0.0
  %177 = vmatpush1.msra.mxu0 0.0
  %178 = vmatprep.subr.mxu0 0.0
  %179 = vmatpush1.msra.mxu0 0.0
  %180 = vmatprep.subr.mxu0 0.0
  %181 = vmatpush1.msra.mxu0 0.0
  %182 = vmatprep.subr.mxu0 0.0
  %183 = vmatpush1.msra.mxu0 0.0
  %184 = vmatprep.subr.mxu0 0.0
  %185 = vmatpush1.msra.mxu0 0.0
  %186 = vmatprep.subr.mxu0 0.0
  %187 = vmatpush1.msra.mxu0 0.0
  %188 = vmatprep.subr.mxu0 0.0
  %189 = vmatpush1.msra.mxu0 %v69
  %190 = vmatprep.subr.mxu0 0.0
  %191 = vmatpush1.msra.mxu0 %v20
  %192 = vmatprep.subr.mxu0 0.0
  %193 = vmatpush2.msra.mxu0 0.0
  %194 = vmatprep.subr.mxu0 0.0
  %195 = vmatpush2.msra.mxu0 0.0
  %196 = vmatprep.subr.mxu0 0.0
  %197 = vmatpush2.msra.mxu0 0.0
  %198 = vmatprep.subr.mxu0 0.0
  %199 = vmatpush2.msra.mxu0 0.0
  %200 = vmatprep.subr.mxu0 0.0
  %201 = vmatpush2.msra.mxu0 0.0
  %202 = vmatprep.subr.mxu0 0.0
  %203 = vmatpush2.msra.mxu0 0.0
  %204 = vmatprep.subr.mxu0 0.0
  %205 = vmatpush2.msra.mxu0 0.0
  %206 = vmatprep.subr.mxu0 0.0
  %207 = vmatpush2.msra.mxu0 0.0
  %208 = vmatprep.subr.mxu0 0.0
  %209 = vmatpush2.msra.mxu0 0.0
  %210 = vmatprep.subr.mxu0 0.0
  %211 = vmatpush2.msra.mxu0 0.0
  %212 = vmatprep.subr.mxu0 0.0
  %213 = vmatpush2.msra.mxu0 0.0
  %214 = vmatprep.subr.mxu0 0.0
  %215 = vmatpush2.msra.mxu0 0.0
  %216 = vmatprep.subr.mxu0 0.0
  %217 = vmatpush2.msra.mxu0 0.0
  %218 = vmatprep.subr.mxu0 0.0
  %219 = vmatpush2.msra.mxu0 0.0
  %220 = vmatprep.subr.mxu0 0.0
  %221 = vmatpush2.msra.mxu0 0.0
  %222 = vmatprep.subr.mxu0 0.0
  %223 = vmatpush2.msra.mxu0 0.0
  %224 = vmatprep.mubr.f32.mxu0 0.0
  %225 = vmatmul.mubr.f32.gmra.mxu0 %v50
  %v226 = vpop.f32.mrf.mxu0
  %v227 = vadd.f32 %v31, %v226
  %v228 = vpop.f32.mrf.mxu0
  %229 = vmatprep.mubr.f32.mxu0 0.0
  %230 = vmatmul.mubr.f32.gmra.mxu0 %v53
  %v231 = vpop.f32.mrf.mxu0
  %v232 = vadd.f32 %v36, %v231
  %v233 = vpop.f32.mrf.mxu0
  %234 = vmatprep.mubr.f32.mxu0 0.0
  %235 = vmatmul.mubr.f32.gmra.mxu0 %v56
  %v236 = vpop.f32.mrf.mxu0
  %v237 = vadd.f32 %v41, %v236
  %v238 = vpop.f32.mrf.mxu0
  %239 = vmatprep.mubr.f32.mxu0 0.0
  %240 = vmatmul.mubr.f32.gmra.mxu0 %v59
  %v241 = vpop.f32.mrf.mxu0
  %v242 = vadd.f32 %v46, %v241
  %v243 = vpop.f32.mrf.mxu0
  %244 = vdwg.mxu0
  %v245 = vmax.f32 %v138, 0.0
  %v246 = vmax.f32 %v140, 0.0
  %v247 = vmax.f32 %v227, 0.0
  %v248 = vmax.f32 %v144, 0.0
  %v249 = vmax.f32 %v146, 0.0
  %v250 = vmax.f32 %v232, 0.0
  %v251 = vmax.f32 %v150, 0.0
  %v252 = vmax.f32 %v152, 0.0
  %v253 = vmax.f32 %v237, 0.0
  %v254 = vmax.f32 %v156, 0.0
  %v255 = vmax.f32 %v158, 0.0
  %v256 = vmax.f32 %v242, 0.0
  %257 = vst [vmem:[%s3] sm:$0xff] %v245
  %258 = vst [vmem:[%s3 + $0x8] sm:$0xff] %v246
  %259 = vst [vmem:[%s3 + $0x10] sm:$0xff] %v247
  %260 = vst [vmem:[%s3 + $0x18] sm:$0xff] %v248
  %261 = vst [vmem:[%s3 + $0x20] sm:$0xff] %v249
  %262 = vst [vmem:[%s3 + $0x28] sm:$0xff] %v250
  %263 = vst [vmem:[%s3 + $0x30] sm:$0xff] %v251
  %264 = vst [vmem:[%s3 + $0x38] sm:$0xff] %v252
  %265 = vst [vmem:[%s3 + $0x40] sm:$0xff] %v253
  %266 = vst [vmem:[%s3 + $0x48] sm:$0xff] %v254
  %267 = vst [vmem:[%s3 + $0x50] sm:$0xff] %v255
  %268 = vst [vmem:[%s3 + $0x58] sm:$0xff] %v256
  // Predicated region
  $region14: #{rnumber_forward.8} parent=0 // pred_check
    _
  $region15: #{rnumber_forward.8} parent=0 // pred_check_branch
    %270 = sbr.rel (0) target = $region17
  $region16: #{rnumber_forward.8} parent=0 // pred_region
    _
  $region17: #{rnumber_forward.8} parent=0 // pred_fallthru
    _
  // Predicated region
  $region18: #{rnumber_forward.8} parent=0 // pred_check
    _
  $region19: #{rnumber_forward.8} parent=0 // pred_check_branch
    %272 = sbr.rel (0) target = $region21
  $region20: #{rnumber_forward.8} parent=0 // pred_region
    _
  $region21: #{rnumber_forward.8} parent=0 // pred_fallthru
    _

// kernel: rnumber_forward.9
$region0: #{rnumber_forward.9}
  #allocation0 [shape = 'u32[]', space=smem, size = 0x4, offset = 0x4, fixed_abs, tag = 'smem constant byte address 0x4 - core index']
  #allocation1 [shape = 'u32[144,128]{1,0:T(1,128)}', space=vmem, size = 0x12000, scoped, tag = 'internal scratch']
  %s0 = inlined_call_operand.vmem [shape: f32[16,512], index: 0, kind: input, shape index: {}]
  %s1 = inlined_call_operand.vmem [shape: f32[512,256], index: 1, kind: input, shape index: {}]
  %s2 = inlined_call_operand.vmem [shape: f32[16,1], index: 2, kind: input, shape index: {}]
  %s3 = inlined_call_operand.vmem [shape: f32[16,256], index: 3, kind: output, shape index: {}]
  %s4 = sld [smem:[#allocation0]]
  $region22: #{rnumber_forward.9} parent=0
    _
  %s6 = ssub.s32 1, %s4
  %s7 = scalar_select 0, %s6, %s4
  // Predicated region
  $region2: #{rnumber_forward.9} parent=0 // pred_check
    _
  $region3: #{rnumber_forward.9} parent=0 // pred_check_branch
    %9 = sbr.rel (0) target = $region5
  $region4: #{rnumber_forward.9} parent=0 // pred_region
    _
  $region5: #{rnumber_forward.9} parent=0 // pred_fallthru
    _
  // Predicated region
  $region6: #{rnumber_forward.9} parent=0 // pred_check
    _
  $region7: #{rnumber_forward.9} parent=0 // pred_check_branch
    %11 = sbr.rel (0) target = $region9
  $region8: #{rnumber_forward.9} parent=0 // pred_region
    _
  $region9: #{rnumber_forward.9} parent=0 // pred_fallthru
    _
  // Predicated region
  $region10: #{rnumber_forward.9} parent=0 // pred_check
    _
  $region11: #{rnumber_forward.9} parent=0 // pred_check_branch
    %13 = sbr.rel (0) target = $region13
  $region12: #{rnumber_forward.9} parent=0 // pred_region
    _
  $region13: #{rnumber_forward.9} parent=0 // pred_fallthru
    _
  %v14 = vld [vmem:[%s0] sm:$0xff]
  %v15 = vld [vmem:[%s0 + $0x8] sm:$0xff]
  %v16 = vld [vmem:[%s0 + $0x10] sm:$0xff]
  %v17 = vld [vmem:[%s0 + $0x18] sm:$0xff]
  %v18 = vld [vmem:[%s0 + $0x20] sm:$0xff]
  %v19 = vld [vmem:[%s0 + $0x28] sm:$0xff]
  %v20 = vld [vmem:[%s0 + $0x30] sm:$0xff]
  %v21 = vld [vmem:[%s0 + $0x38] sm:$0xff]
  %v22 = vld [vmem:[%s1] sm:$0xff]
  %v23 = vld [vmem:[%s1 + $0x8] sm:$0xff]
  %v24 = vld [vmem:[%s1 + $0x10] sm:$0xff]
  %v25 = vld [vmem:[%s1 + $0x18] sm:$0xff]
  %v26 = vld [vmem:[%s1 + $0x20] sm:$0xff]
  %v27 = vld [vmem:[%s1 + $0x28] sm:$0xff]
  %v28 = vld [vmem:[%s1 + $0x30] sm:$0xff]
  %v29 = vld [vmem:[%s1 + $0x38] sm:$0xff]
  %v30 = vld [vmem:[%s1 + $0x40] sm:$0xff]
  %v31 = vld [vmem:[%s1 + $0x48] sm:$0xff]
  %v32 = vld [vmem:[%s1 + $0x50] sm:$0xff]
  %v33 = vld [vmem:[%s1 + $0x58] sm:$0xff]
  %v34 = vld [vmem:[%s1 + $0x60] sm:$0xff]
  %v35 = vld [vmem:[%s1 + $0x68] sm:$0xff]
  %v36 = vld [vmem:[%s1 + $0x70] sm:$0xff]
  %v37 = vld [vmem:[%s1 + $0x78] sm:$0xff]
  %v38 = vld [vmem:[%s1 + $0x80] sm:$0xff]
  %v39 = vld [vmem:[%s1 + $0x88] sm:$0xff]
  %v40 = vld [vmem:[%s1 + $0x90] sm:$0xff]
  %v41 = vld [vmem:[%s1 + $0x98] sm:$0xff]
  %v42 = vld [vmem:[%s1 + $0xa0] sm:$0xff]
  %v43 = vld [vmem:[%s1 + $0xa8] sm:$0xff]
  %v44 = vld [vmem:[%s1 + $0xb0] sm:$0xff]
  %v45 = vld [vmem:[%s1 + $0xb8] sm:$0xff]
  %v46 = vld [vmem:[%s1 + $0xc0] sm:$0xff]
  %v47 = vld [vmem:[%s1 + $0xc8] sm:$0xff]
  %v48 = vld [vmem:[%s1 + $0xd0] sm:$0xff]
  %v49 = vld [vmem:[%s1 + $0xd8] sm:$0xff]
  %v50 = vld [vmem:[%s1 + $0xe0] sm:$0xff]
  %v51 = vld [vmem:[%s1 + $0xe8] sm:$0xff]
  %v52 = vld [vmem:[%s1 + $0xf0] sm:$0xff]
  %v53 = vld [vmem:[%s1 + $0xf8] sm:$0xff]
  %v54 = vld [vmem:[%s1 + $0x100] sm:$0xff]
  %v55 = vld [vmem:[%s1 + $0x108] sm:$0xff]
  %v56 = vld [vmem:[%s1 + $0x110] sm:$0xff]
  %v57 = vld [vmem:[%s1 + $0x118] sm:$0xff]
  %v58 = vld [vmem:[%s1 + $0x120] sm:$0xff]
  %v59 = vld [vmem:[%s1 + $0x128] sm:$0xff]
  %v60 = vld [vmem:[%s1 + $0x130] sm:$0xff]
  %v61 = vld [vmem:[%s1 + $0x138] sm:$0xff]
  %v62 = vld [vmem:[%s1 + $0x140] sm:$0xff]
  %v63 = vld [vmem:[%s1 + $0x148] sm:$0xff]
  %v64 = vld [vmem:[%s1 + $0x150] sm:$0xff]
  %v65 = vld [vmem:[%s1 + $0x158] sm:$0xff]
  %v66 = vld [vmem:[%s1 + $0x160] sm:$0xff]
  %v67 = vld [vmem:[%s1 + $0x168] sm:$0xff]
  %v68 = vld [vmem:[%s1 + $0x170] sm:$0xff]
  %v69 = vld [vmem:[%s1 + $0x178] sm:$0xff]
  %v70 = vld [vmem:[%s1 + $0x180] sm:$0xff]
  %v71 = vld [vmem:[%s1 + $0x188] sm:$0xff]
  %v72 = vld [vmem:[%s1 + $0x190] sm:$0xff]
  %v73 = vld [vmem:[%s1 + $0x198] sm:$0xff]
  %v74 = vld [vmem:[%s1 + $0x1a0] sm:$0xff]
  %v75 = vld [vmem:[%s1 + $0x1a8] sm:$0xff]
  %v76 = vld [vmem:[%s1 + $0x1b0] sm:$0xff]
  %v77 = vld [vmem:[%s1 + $0x1b8] sm:$0xff]
  %v78 = vld [vmem:[%s1 + $0x1c0] sm:$0xff]
  %v79 = vld [vmem:[%s1 + $0x1c8] sm:$0xff]
  %v80 = vld [vmem:[%s1 + $0x1d0] sm:$0xff]
  %v81 = vld [vmem:[%s1 + $0x1d8] sm:$0xff]
  %v82 = vld [vmem:[%s1 + $0x1e0] sm:$0xff]
  %v83 = vld [vmem:[%s1 + $0x1e8] sm:$0xff]
  %v84 = vld [vmem:[%s1 + $0x1f0] sm:$0xff]
  %v85 = vld [vmem:[%s1 + $0x1f8] sm:$0xff]
  %v86 = vld [vmem:[%s1 + $0x200] sm:$0xff]
  %v87 = vld [vmem:[%s1 + $0x208] sm:$0xff]
  %v88 = vld [vmem:[%s1 + $0x210] sm:$0xff]
  %v89 = vld [vmem:[%s1 + $0x218] sm:$0xff]
  %v90 = vld [vmem:[%s1 + $0x220] sm:$0xff]
  %v91 = vld [vmem:[%s1 + $0x228] sm:$0xff]
  %v92 = vld [vmem:[%s1 + $0x230] sm:$0xff]
  %v93 = vld [vmem:[%s1 + $0x238] sm:$0xff]
  %v94 = vld [vmem:[%s1 + $0x240] sm:$0xff]
  %v95 = vld [vmem:[%s1 + $0x248] sm:$0xff]
  %v96 = vld [vmem:[%s1 + $0x250] sm:$0xff]
  %v97 = vld [vmem:[%s1 + $0x258] sm:$0xff]
  %v98 = vld [vmem:[%s1 + $0x260] sm:$0xff]
  %v99 = vld [vmem:[%s1 + $0x268] sm:$0xff]
  %v100 = vld [vmem:[%s1 + $0x270] sm:$0xff]
  %v101 = vld [vmem:[%s1 + $0x278] sm:$0xff]
  %v102 = vld [vmem:[%s1 + $0x280] sm:$0xff]
  %v103 = vld [vmem:[%s1 + $0x288] sm:$0xff]
  %v104 = vld [vmem:[%s1 + $0x290] sm:$0xff]
  %v105 = vld [vmem:[%s1 + $0x298] sm:$0xff]
  %v106 = vld [vmem:[%s1 + $0x2a0] sm:$0xff]
  %v107 = vld [vmem:[%s1 + $0x2a8] sm:$0xff]
  %v108 = vld [vmem:[%s1 + $0x2b0] sm:$0xff]
  %v109 = vld [vmem:[%s1 + $0x2b8] sm:$0xff]
  %v110 = vld [vmem:[%s1 + $0x2c0] sm:$0xff]
  %v111 = vld [vmem:[%s1 + $0x2c8] sm:$0xff]
  %v112 = vld [vmem:[%s1 + $0x2d0] sm:$0xff]
  %v113 = vld [vmem:[%s1 + $0x2d8] sm:$0xff]
  %v114 = vld [vmem:[%s1 + $0x2e0] sm:$0xff]
  %v115 = vld [vmem:[%s1 + $0x2e8] sm:$0xff]
  %v116 = vld [vmem:[%s1 + $0x2f0] sm:$0xff]
  %v117 = vld [vmem:[%s1 + $0x2f8] sm:$0xff]
  %v118 = vld [vmem:[%s1 + $0x300] sm:$0xff]
  %v119 = vld [vmem:[%s1 + $0x308] sm:$0xff]
  %v120 = vld [vmem:[%s1 + $0x310] sm:$0xff]
  %v121 = vld [vmem:[%s1 + $0x318] sm:$0xff]
  %v122 = vld [vmem:[%s1 + $0x320] sm:$0xff]
  %v123 = vld [vmem:[%s1 + $0x328] sm:$0xff]
  %v124 = vld [vmem:[%s1 + $0x330] sm:$0xff]
  %v125 = vld [vmem:[%s1 + $0x338] sm:$0xff]
  %v126 = vld [vmem:[%s1 + $0x340] sm:$0xff]
  %v127 = vld [vmem:[%s1 + $0x348] sm:$0xff]
  %v128 = vld [vmem:[%s1 + $0x350] sm:$0xff]
  %v129 = vld [vmem:[%s1 + $0x358] sm:$0xff]
  %v130 = vld [vmem:[%s1 + $0x360] sm:$0xff]
  %v131 = vld [vmem:[%s1 + $0x368] sm:$0xff]
  %v132 = vld [vmem:[%s1 + $0x370] sm:$0xff]
  %v133 = vld [vmem:[%s1 + $0x378] sm:$0xff]
  %v134 = vld [vmem:[%s1 + $0x380] sm:$0xff]
  %v135 = vld [vmem:[%s1 + $0x388] sm:$0xff]
  %v136 = vld [vmem:[%s1 + $0x390] sm:$0xff]
  %v137 = vld [vmem:[%s1 + $0x398] sm:$0xff]
  %v138 = vld [vmem:[%s1 + $0x3a0] sm:$0xff]
  %v139 = vld [vmem:[%s1 + $0x3a8] sm:$0xff]
  %v140 = vld [vmem:[%s1 + $0x3b0] sm:$0xff]
  %v141 = vld [vmem:[%s1 + $0x3b8] sm:$0xff]
  %v142 = vld [vmem:[%s1 + $0x3c0] sm:$0xff]
  %v143 = vld [vmem:[%s1 + $0x3c8] sm:$0xff]
  %v144 = vld [vmem:[%s1 + $0x3d0] sm:$0xff]
  %v145 = vld [vmem:[%s1 + $0x3d8] sm:$0xff]
  %v146 = vld [vmem:[%s1 + $0x3e0] sm:$0xff]
  %v147 = vld [vmem:[%s1 + $0x3e8] sm:$0xff]
  %v148 = vld [vmem:[%s1 + $0x3f0] sm:$0xff]
  %v149 = vld [vmem:[%s1 + $0x3f8] sm:$0xff]
  %v150 = vld [vmem:[%s2] sm:$0xff]
  %v151 = vld [vmem:[%s2 + $0x8] sm:$0xff]
  %153 = vset.pattern.permute.xlu0 0
  %154 = vperm.xlu0 %153, %v150
  %v155 = vpop.permute.xlu0 %154
  %158 = vset.pattern.permute.xlu0 0
  %159 = vperm.xlu0 %158, %v151
  %v160 = vpop.permute.xlu0 %159
  %162 = vmatprep.subr.mxu0 %v53
  %163 = vmatpush1.msra.mxu0 %v52
  %164 = vmatprep.subr.mxu0 %v51
  %165 = vmatpush1.msra.mxu0 %v50
  %166 = vmatprep.subr.mxu0 %v49
  %167 = vmatpush1.msra.mxu0 %v48
  %168 = vmatprep.subr.mxu0 %v47
  %169 = vmatpush1.msra.mxu0 %v46
  %170 = vmatprep.subr.mxu0 %v45
  %171 = vmatpush1.msra.mxu0 %v44
  %172 = vmatprep.subr.mxu0 %v43
  %173 = vmatpush1.msra.mxu0 %v42
  %174 = vmatprep.subr.mxu0 %v41
  %175 = vmatpush1.msra.mxu0 %v40
  %176 = vmatprep.subr.mxu0 %v39
  %177 = vmatpush1.msra.mxu0 %v38
  %178 = vmatprep.subr.mxu0 %v37
  %179 = vmatpush1.msra.mxu0 %v36
  %180 = vmatprep.subr.mxu0 %v35
  %181 = vmatpush1.msra.mxu0 %v34
  %182 = vmatprep.subr.mxu0 %v33
  %183 = vmatpush1.msra.mxu0 %v32
  %184 = vmatprep.subr.mxu0 %v31
  %185 = vmatpush1.msra.mxu0 %v30
  %186 = vmatprep.subr.mxu0 %v29
  %187 = vmatpush1.msra.mxu0 %v28
  %188 = vmatprep.subr.mxu0 %v27
  %189 = vmatpush1.msra.mxu0 %v26
  %190 = vmatprep.subr.mxu0 %v25
  %191 = vmatpush1.msra.mxu0 %v24
  %192 = vmatprep.subr.mxu0 %v23
  %193 = vmatpush1.msra.mxu0 %v22
  %194 = vmatprep.subr.mxu0 %v85
  %195 = vmatpush2.msra.mxu0 %v84
  %196 = vmatprep.subr.mxu0 %v83
  %197 = vmatpush2.msra.mxu0 %v82
  %198 = vmatprep.subr.mxu0 %v81
  %199 = vmatpush2.msra.mxu0 %v80
  %200 = vmatprep.subr.mxu0 %v79
  %201 = vmatpush2.msra.mxu0 %v78
  %202 = vmatprep.subr.mxu0 %v77
  %203 = vmatpush2.msra.mxu0 %v76
  %204 = vmatprep.subr.mxu0 %v75
  %205 = vmatpush2.msra.mxu0 %v74
  %206 = vmatprep.subr.mxu0 %v73
  %207 = vmatpush2.msra.mxu0 %v72
  %208 = vmatprep.subr.mxu0 %v71
  %209 = vmatpush2.msra.mxu0 %v70
  %210 = vmatprep.subr.mxu0 %v69
  %211 = vmatpush2.msra.mxu0 %v68
  %212 = vmatprep.subr.mxu0 %v67
  %213 = vmatpush2.msra.mxu0 %v66
  %214 = vmatprep.subr.mxu0 %v65
  %215 = vmatpush2.msra.mxu0 %v64
  %216 = vmatprep.subr.mxu0 %v63
  %217 = vmatpush2.msra.mxu0 %v62
  %218 = vmatprep.subr.mxu0 %v61
  %219 = vmatpush2.msra.mxu0 %v60
  %220 = vmatprep.subr.mxu0 %v59
  %221 = vmatpush2.msra.mxu0 %v58
  %222 = vmatprep.subr.mxu0 %v57
  %223 = vmatpush2.msra.mxu0 %v56
  %224 = vmatprep.subr.mxu0 %v55
  %225 = vmatpush2.msra.mxu0 %v54
  %226 = vmatprep.mubr.f32.mxu0 %v15
  %227 = vmatmul.mubr.f32.gmra.mxu0 %v14
  %v228 = vpop.f32.mrf.mxu0
  %v229 = vadd.f32 %v155, %v228
  %v230 = vpop.f32.mrf.mxu0
  %v231 = vadd.f32 %v155, %v230
  %232 = vmatprep.mubr.f32.mxu0 %v19
  %233 = vmatmul.mubr.f32.gmra.mxu0 %v18
  %v234 = vpop.f32.mrf.mxu0
  %v235 = vadd.f32 %v160, %v234
  %v236 = vpop.f32.mrf.mxu0
  %v237 = vadd.f32 %v160, %v236
  %238 = vdwg.mxu0
  %239 = vmatprep.subr.mxu0 %v117
  %240 = vmatpush1.msra.mxu0 %v116
  %241 = vmatprep.subr.mxu0 %v115
  %242 = vmatpush1.msra.mxu0 %v114
  %243 = vmatprep.subr.mxu0 %v113
  %244 = vmatpush1.msra.mxu0 %v112
  %245 = vmatprep.subr.mxu0 %v111
  %246 = vmatpush1.msra.mxu0 %v110
  %247 = vmatprep.subr.mxu0 %v109
  %248 = vmatpush1.msra.mxu0 %v108
  %249 = vmatprep.subr.mxu0 %v107
  %250 = vmatpush1.msra.mxu0 %v106
  %251 = vmatprep.subr.mxu0 %v105
  %252 = vmatpush1.msra.mxu0 %v104
  %253 = vmatprep.subr.mxu0 %v103
  %254 = vmatpush1.msra.mxu0 %v102
  %255 = vmatprep.subr.mxu0 %v101
  %256 = vmatpush1.msra.mxu0 %v100
  %257 = vmatprep.subr.mxu0 %v99
  %258 = vmatpush1.msra.mxu0 %v98
  %259 = vmatprep.subr.mxu0 %v97
  %260 = vmatpush1.msra.mxu0 %v96
  %261 = vmatprep.subr.mxu0 %v95
  %262 = vmatpush1.msra.mxu0 %v94
  %263 = vmatprep.subr.mxu0 %v93
  %264 = vmatpush1.msra.mxu0 %v92
  %265 = vmatprep.subr.mxu0 %v91
  %266 = vmatpush1.msra.mxu0 %v90
  %267 = vmatprep.subr.mxu0 %v89
  %268 = vmatpush1.msra.mxu0 %v88
  %269 = vmatprep.subr.mxu0 %v87
  %270 = vmatpush1.msra.mxu0 %v86
  %271 = vmatprep.subr.mxu0 %v149
  %272 = vmatpush2.msra.mxu0 %v148
  %273 = vmatprep.subr.mxu0 %v147
  %274 = vmatpush2.msra.mxu0 %v146
  %275 = vmatprep.subr.mxu0 %v145
  %276 = vmatpush2.msra.mxu0 %v144
  %277 = vmatprep.subr.mxu0 %v143
  %278 = vmatpush2.msra.mxu0 %v142
  %279 = vmatprep.subr.mxu0 %v141
  %280 = vmatpush2.msra.mxu0 %v140
  %281 = vmatprep.subr.mxu0 %v139
  %282 = vmatpush2.msra.mxu0 %v138
  %283 = vmatprep.subr.mxu0 %v137
  %284 = vmatpush2.msra.mxu0 %v136
  %285 = vmatprep.subr.mxu0 %v135
  %286 = vmatpush2.msra.mxu0 %v134
  %287 = vmatprep.subr.mxu0 %v133
  %288 = vmatpush2.msra.mxu0 %v132
  %289 = vmatprep.subr.mxu0 %v131
  %290 = vmatpush2.msra.mxu0 %v130
  %291 = vmatprep.subr.mxu0 %v129
  %292 = vmatpush2.msra.mxu0 %v128
  %293 = vmatprep.subr.mxu0 %v127
  %294 = vmatpush2.msra.mxu0 %v126
  %295 = vmatprep.subr.mxu0 %v125
  %296 = vmatpush2.msra.mxu0 %v124
  %297 = vmatprep.subr.mxu0 %v123
  %298 = vmatpush2.msra.mxu0 %v122
  %299 = vmatprep.subr.mxu0 %v121
  %300 = vmatpush2.msra.mxu0 %v120
  %301 = vmatprep.subr.mxu0 %v119
  %302 = vmatpush2.msra.mxu0 %v118
  %303 = vmatprep.mubr.f32.mxu0 %v17
  %304 = vmatmul.mubr.f32.gmra.mxu0 %v16
  %v305 = vpop.f32.mrf.mxu0
  %v306 = vadd.f32 %v229, %v305
  %v307 = vpop.f32.mrf.mxu0
  %v308 = vadd.f32 %v231, %v307
  %309 = vmatprep.mubr.f32.mxu0 %v21
  %310 = vmatmul.mubr.f32.gmra.mxu0 %v20
  %v311 = vpop.f32.mrf.mxu0
  %v312 = vadd.f32 %v235, %v311
  %v313 = vpop.f32.mrf.mxu0
  %v314 = vadd.f32 %v237, %v313
  %315 = vdwg.mxu0
  %v316 = vmax.f32 %v306, 0.0
  %v317 = vmax.f32 %v308, 0.0
  %v318 = vmax.f32 %v312, 0.0
  %v319 = vmax.f32 %v314, 0.0
  %320 = vst [vmem:[%s3] sm:$0xff] %v316
  %321 = vst [vmem:[%s3 + $0x8] sm:$0xff] %v317
  %322 = vst [vmem:[%s3 + $0x10] sm:$0xff] %v318
  %323 = vst [vmem:[%s3 + $0x18] sm:$0xff] %v319
  // Predicated region
  $region14: #{rnumber_forward.9} parent=0 // pred_check
    _
  $region15: #{rnumber_forward.9} parent=0 // pred_check_branch
    %325 = sbr.rel (0) target = $region17
  $region16: #{rnumber_forward.9} parent=0 // pred_region
    _
  $region17: #{rnumber_forward.9} parent=0 // pred_fallthru
    _
  // Predicated region
  $region18: #{rnumber_forward.9} parent=0 // pred_check
    _
  $region19: #{rnumber_forward.9} parent=0 // pred_check_branch
    %327 = sbr.rel (0) target = $region21
  $region20: #{rnumber_forward.9} parent=0 // pred_region
    _
  $region21: #{rnumber_forward.9} parent=0 // pred_fallthru
    _

// kernel: rnumber_forward.10
$region0: #{rnumber_forward.10}
  #allocation0 [shape = 'u32[]', space=smem, size = 0x4, offset = 0x4, fixed_abs, tag = 'smem constant byte address 0x4 - core index']
  #allocation1 [shape = 'u32[144,128]{1,0:T(1,128)}', space=vmem, size = 0x12000, scoped, tag = 'internal scratch']
  %s0 = inlined_call_operand.vmem [shape: f32[16,256], index: 0, kind: input, shape index: {}]
  %s1 = inlined_call_operand.vmem [shape: f32[256,128], index: 1, kind: input, shape index: {}]
  %s2 = inlined_call_operand.vmem [shape: f32[16,1], index: 2, kind: input, shape index: {}]
  %s3 = inlined_call_operand.vmem [shape: f32[16,128], index: 3, kind: output, shape index: {}]
  %s4 = sld [smem:[#allocation0]]
  $region22: #{rnumber_forward.10} parent=0
    _
  %s6 = ssub.s32 1, %s4
  %s7 = scalar_select 0, %s6, %s4
  // Predicated region
  $region2: #{rnumber_forward.10} parent=0 // pred_check
    _
  $region3: #{rnumber_forward.10} parent=0 // pred_check_branch
    %9 = sbr.rel (0) target = $region5
  $region4: #{rnumber_forward.10} parent=0 // pred_region
    _
  $region5: #{rnumber_forward.10} parent=0 // pred_fallthru
    _
  // Predicated region
  $region6: #{rnumber_forward.10} parent=0 // pred_check
    _
  $region7: #{rnumber_forward.10} parent=0 // pred_check_branch
    %11 = sbr.rel (0) target = $region9
  $region8: #{rnumber_forward.10} parent=0 // pred_region
    _
  $region9: #{rnumber_forward.10} parent=0 // pred_fallthru
    _
  // Predicated region
  $region10: #{rnumber_forward.10} parent=0 // pred_check
    _
  $region11: #{rnumber_forward.10} parent=0 // pred_check_branch
    %13 = sbr.rel (0) target = $region13
  $region12: #{rnumber_forward.10} parent=0 // pred_region
    _
  $region13: #{rnumber_forward.10} parent=0 // pred_fallthru
    _
  %v14 = vld [vmem:[%s0] sm:$0xff]
  %v15 = vld [vmem:[%s0 + $0x8] sm:$0xff]
  %v16 = vld [vmem:[%s0 + $0x10] sm:$0xff]
  %v17 = vld [vmem:[%s0 + $0x18] sm:$0xff]
  %v18 = vld [vmem:[%s1] sm:$0xff]
  %v19 = vld [vmem:[%s1 + $0x8] sm:$0xff]
  %v20 = vld [vmem:[%s1 + $0x10] sm:$0xff]
  %v21 = vld [vmem:[%s1 + $0x18] sm:$0xff]
  %v22 = vld [vmem:[%s1 + $0x20] sm:$0xff]
  %v23 = vld [vmem:[%s1 + $0x28] sm:$0xff]
  %v24 = vld [vmem:[%s1 + $0x30] sm:$0xff]
  %v25 = vld [vmem:[%s1 + $0x38] sm:$0xff]
  %v26 = vld [vmem:[%s1 + $0x40] sm:$0xff]
  %v27 = vld [vmem:[%s1 + $0x48] sm:$0xff]
  %v28 = vld [vmem:[%s1 + $0x50] sm:$0xff]
  %v29 = vld [vmem:[%s1 + $0x58] sm:$0xff]
  %v30 = vld [vmem:[%s1 + $0x60] sm:$0xff]
  %v31 = vld [vmem:[%s1 + $0x68] sm:$0xff]
  %v32 = vld [vmem:[%s1 + $0x70] sm:$0xff]
  %v33 = vld [vmem:[%s1 + $0x78] sm:$0xff]
  %v34 = vld [vmem:[%s1 + $0x80] sm:$0xff]
  %v35 = vld [vmem:[%s1 + $0x88] sm:$0xff]
  %v36 = vld [vmem:[%s1 + $0x90] sm:$0xff]
  %v37 = vld [vmem:[%s1 + $0x98] sm:$0xff]
  %v38 = vld [vmem:[%s1 + $0xa0] sm:$0xff]
  %v39 = vld [vmem:[%s1 + $0xa8] sm:$0xff]
  %v40 = vld [vmem:[%s1 + $0xb0] sm:$0xff]
  %v41 = vld [vmem:[%s1 + $0xb8] sm:$0xff]
  %v42 = vld [vmem:[%s1 + $0xc0] sm:$0xff]
  %v43 = vld [vmem:[%s1 + $0xc8] sm:$0xff]
  %v44 = vld [vmem:[%s1 + $0xd0] sm:$0xff]
  %v45 = vld [vmem:[%s1 + $0xd8] sm:$0xff]
  %v46 = vld [vmem:[%s1 + $0xe0] sm:$0xff]
  %v47 = vld [vmem:[%s1 + $0xe8] sm:$0xff]
  %v48 = vld [vmem:[%s1 + $0xf0] sm:$0xff]
  %v49 = vld [vmem:[%s1 + $0xf8] sm:$0xff]
  %v50 = vld [vmem:[%s2] sm:$0xff]
  %v51 = vld [vmem:[%s2 + $0x8] sm:$0xff]
  %53 = vset.pattern.permute.xlu0 0
  %54 = vperm.xlu0 %53, %v50
  %v55 = vpop.permute.xlu0 %54
  %58 = vset.pattern.permute.xlu0 0
  %59 = vperm.xlu0 %58, %v51
  %v60 = vpop.permute.xlu0 %59
  %62 = vmatprep.subr.mxu0 0.0
  %63 = vmatpush1.msra.mxu0 %v33
  %64 = vmatprep.subr.mxu0 0.0
  %65 = vmatpush1.msra.mxu0 %v32
  %66 = vmatprep.subr.mxu0 0.0
  %67 = vmatpush1.msra.mxu0 %v31
  %68 = vmatprep.subr.mxu0 0.0
  %69 = vmatpush1.msra.mxu0 %v30
  %70 = vmatprep.subr.mxu0 0.0
  %71 = vmatpush1.msra.mxu0 %v29
  %72 = vmatprep.subr.mxu0 0.0
  %73 = vmatpush1.msra.mxu0 %v28
  %74 = vmatprep.subr.mxu0 0.0
  %75 = vmatpush1.msra.mxu0 %v27
  %76 = vmatprep.subr.mxu0 0.0
  %77 = vmatpush1.msra.mxu0 %v26
  %78 = vmatprep.subr.mxu0 0.0
  %79 = vmatpush1.msra.mxu0 %v25
  %80 = vmatprep.subr.mxu0 0.0
  %81 = vmatpush1.msra.mxu0 %v24
  %82 = vmatprep.subr.mxu0 0.0
  %83 = vmatpush1.msra.mxu0 %v23
  %84 = vmatprep.subr.mxu0 0.0
  %85 = vmatpush1.msra.mxu0 %v22
  %86 = vmatprep.subr.mxu0 0.0
  %87 = vmatpush1.msra.mxu0 %v21
  %88 = vmatprep.subr.mxu0 0.0
  %89 = vmatpush1.msra.mxu0 %v20
  %90 = vmatprep.subr.mxu0 0.0
  %91 = vmatpush1.msra.mxu0 %v19
  %92 = vmatprep.subr.mxu0 0.0
  %93 = vmatpush1.msra.mxu0 %v18
  %94 = vmatprep.subr.mxu0 0.0
  %95 = vmatpush2.msra.mxu0 %v49
  %96 = vmatprep.subr.mxu0 0.0
  %97 = vmatpush2.msra.mxu0 %v48
  %98 = vmatprep.subr.mxu0 0.0
  %99 = vmatpush2.msra.mxu0 %v47
  %100 = vmatprep.subr.mxu0 0.0
  %101 = vmatpush2.msra.mxu0 %v46
  %102 = vmatprep.subr.mxu0 0.0
  %103 = vmatpush2.msra.mxu0 %v45
  %104 = vmatprep.subr.mxu0 0.0
  %105 = vmatpush2.msra.mxu0 %v44
  %106 = vmatprep.subr.mxu0 0.0
  %107 = vmatpush2.msra.mxu0 %v43
  %108 = vmatprep.subr.mxu0 0.0
  %109 = vmatpush2.msra.mxu0 %v42
  %110 = vmatprep.subr.mxu0 0.0
  %111 = vmatpush2.msra.mxu0 %v41
  %112 = vmatprep.subr.mxu0 0.0
  %113 = vmatpush2.msra.mxu0 %v40
  %114 = vmatprep.subr.mxu0 0.0
  %115 = vmatpush2.msra.mxu0 %v39
  %116 = vmatprep.subr.mxu0 0.0
  %117 = vmatpush2.msra.mxu0 %v38
  %118 = vmatprep.subr.mxu0 0.0
  %119 = vmatpush2.msra.mxu0 %v37
  %120 = vmatprep.subr.mxu0 0.0
  %121 = vmatpush2.msra.mxu0 %v36
  %122 = vmatprep.subr.mxu0 0.0
  %123 = vmatpush2.msra.mxu0 %v35
  %124 = vmatprep.subr.mxu0 0.0
  %125 = vmatpush2.msra.mxu0 %v34
  %126 = vmatprep.mubr.f32.mxu0 %v15
  %127 = vmatmul.mubr.f32.gmra.mxu0 %v14
  %v128 = vpop.f32.mrf.mxu0
  %v129 = vadd.f32 %v55, %v128
  %v130 = vpop.f32.mrf.mxu0
  %131 = vmatprep.mubr.f32.mxu0 %v17
  %132 = vmatmul.mubr.f32.gmra.mxu0 %v16
  %v133 = vpop.f32.mrf.mxu0
  %v134 = vadd.f32 %v60, %v133
  %v135 = vpop.f32.mrf.mxu0
  %136 = vdwg.mxu0
  %137 = vst [vmem:[%s3] sm:$0xff] %v129
  %138 = vst [vmem:[%s3 + $0x8] sm:$0xff] %v134
  // Predicated region
  $region14: #{rnumber_forward.10} parent=0 // pred_check
    _
  $region15: #{rnumber_forward.10} parent=0 // pred_check_branch
    %140 = sbr.rel (0) target = $region17
  $region16: #{rnumber_forward.10} parent=0 // pred_region
    _
  $region17: #{rnumber_forward.10} parent=0 // pred_fallthru
    _
  // Predicated region
  $region18: #{rnumber_forward.10} parent=0 // pred_check
    _
  $region19: #{rnumber_forward.10} parent=0 // pred_check_branch
    %142 = sbr.rel (0) target = $region21
  $region20: #{rnumber_forward.10} parent=0 // pred_region
    _
  $region21: #{rnumber_forward.10} parent=0 // pred_fallthru
    _

// kernel: rnumber_forward.11
$region0: #{rnumber_forward.11}
  #allocation0 [shape = 'u32[]', space=smem, size = 0x4, offset = 0x4, fixed_abs, tag = 'smem constant byte address 0x4 - core index']
  #allocation1 [shape = 'u32[144,128]{1,0:T(1,128)}', space=vmem, size = 0x12000, scoped, tag = 'internal scratch']
  %s0 = inlined_call_operand.vmem [shape: f32[64,64], index: 0, kind: input, shape index: {}]
  %s1 = inlined_call_operand.vmem [shape: f32[64,128], index: 1, kind: input, shape index: {}]
  %s2 = inlined_call_operand.vmem [shape: f32[64,1], index: 2, kind: input, shape index: {}]
  %s3 = inlined_call_operand.vmem [shape: f32[64,128], index: 3, kind: output, shape index: {}]
  %s4 = sld [smem:[#allocation0]]
  $region22: #{rnumber_forward.11} parent=0
    _
  %s6 = ssub.s32 1, %s4
  %s7 = scalar_select 0, %s6, %s4
  // Predicated region
  $region2: #{rnumber_forward.11} parent=0 // pred_check
    _
  $region3: #{rnumber_forward.11} parent=0 // pred_check_branch
    %9 = sbr.rel (0) target = $region5
  $region4: #{rnumber_forward.11} parent=0 // pred_region
    _
  $region5: #{rnumber_forward.11} parent=0 // pred_fallthru
    _
  // Predicated region
  $region6: #{rnumber_forward.11} parent=0 // pred_check
    _
  $region7: #{rnumber_forward.11} parent=0 // pred_check_branch
    %11 = sbr.rel (0) target = $region9
  $region8: #{rnumber_forward.11} parent=0 // pred_region
    _
  $region9: #{rnumber_forward.11} parent=0 // pred_fallthru
    _
  // Predicated region
  $region10: #{rnumber_forward.11} parent=0 // pred_check
    _
  $region11: #{rnumber_forward.11} parent=0 // pred_check_branch
    %13 = sbr.rel (0) target = $region13
  $region12: #{rnumber_forward.11} parent=0 // pred_region
    _
  $region13: #{rnumber_forward.11} parent=0 // pred_fallthru
    _
  %v14 = vld [vmem:[%s0] sm:$0xff]
  %v15 = vld [vmem:[%s0 + $0x8] sm:$0xff]
  %v16 = vld [vmem:[%s0 + $0x10] sm:$0xff]
  %v17 = vld [vmem:[%s0 + $0x18] sm:$0xff]
  %v18 = vld [vmem:[%s0 + $0x20] sm:$0xff]
  %v19 = vld [vmem:[%s0 + $0x28] sm:$0xff]
  %v20 = vld [vmem:[%s0 + $0x30] sm:$0xff]
  %v21 = vld [vmem:[%s0 + $0x38] sm:$0xff]
  %v22 = vld [vmem:[%s1] sm:$0xff]
  %v23 = vld [vmem:[%s1 + $0x8] sm:$0xff]
  %v24 = vld [vmem:[%s1 + $0x10] sm:$0xff]
  %v25 = vld [vmem:[%s1 + $0x18] sm:$0xff]
  %v26 = vld [vmem:[%s1 + $0x20] sm:$0xff]
  %v27 = vld [vmem:[%s1 + $0x28] sm:$0xff]
  %v28 = vld [vmem:[%s1 + $0x30] sm:$0xff]
  %v29 = vld [vmem:[%s1 + $0x38] sm:$0xff]
  %v30 = vld [vmem:[%s2] sm:$0xff]
  %v31 = vld [vmem:[%s2 + $0x8] sm:$0xff]
  %v32 = vld [vmem:[%s2 + $0x10] sm:$0xff]
  %v33 = vld [vmem:[%s2 + $0x18] sm:$0xff]
  %v34 = vld [vmem:[%s2 + $0x20] sm:$0xff]
  %v35 = vld [vmem:[%s2 + $0x28] sm:$0xff]
  %v36 = vld [vmem:[%s2 + $0x30] sm:$0xff]
  %v37 = vld [vmem:[%s2 + $0x38] sm:$0xff]
  %39 = vset.pattern.permute.xlu0 0
  %40 = vperm.xlu0 %39, %v30
  %v41 = vpop.permute.xlu0 %40
  %44 = vset.pattern.permute.xlu0 0
  %45 = vperm.xlu0 %44, %v31
  %v46 = vpop.permute.xlu0 %45
  %49 = vset.pattern.permute.xlu0 0
  %50 = vperm.xlu0 %49, %v32
  %v51 = vpop.permute.xlu0 %50
  %54 = vset.pattern.permute.xlu0 0
  %55 = vperm.xlu0 %54, %v33
  %v56 = vpop.permute.xlu0 %55
  %59 = vset.pattern.permute.xlu0 0
  %60 = vperm.xlu0 %59, %v34
  %v61 = vpop.permute.xlu0 %60
  %64 = vset.pattern.permute.xlu0 0
  %65 = vperm.xlu0 %64, %v35
  %v66 = vpop.permute.xlu0 %65
  %69 = vset.pattern.permute.xlu0 0
  %70 = vperm.xlu0 %69, %v36
  %v71 = vpop.permute.xlu0 %70
  %74 = vset.pattern.permute.xlu0 0
  %75 = vperm.xlu0 %74, %v37
  %v76 = vpop.permute.xlu0 %75
  %vm78 = vcmask 523264
  %v80 = vsel %vm78, %v14, 0
  %v83 = vsel %vm78, %v15, 0
  %v86 = vsel %vm78, %v16, 0
  %v89 = vsel %vm78, %v17, 0
  %v92 = vsel %vm78, %v18, 0
  %v95 = vsel %vm78, %v19, 0
  %v98 = vsel %vm78, %v20, 0
  %v101 = vsel %vm78, %v21, 0
  %103 = vmatprep.subr.mxu0 0.0
  %104 = vmatpush1.msra.mxu0 0.0
  %105 = vmatprep.subr.mxu0 0.0
  %106 = vmatpush1.msra.mxu0 0.0
  %107 = vmatprep.subr.mxu0 0.0
  %108 = vmatpush1.msra.mxu0 0.0
  %109 = vmatprep.subr.mxu0 0.0
  %110 = vmatpush1.msra.mxu0 0.0
  %111 = vmatprep.subr.mxu0 0.0
  %112 = vmatpush1.msra.mxu0 0.0
  %113 = vmatprep.subr.mxu0 0.0
  %114 = vmatpush1.msra.mxu0 0.0
  %115 = vmatprep.subr.mxu0 0.0
  %116 = vmatpush1.msra.mxu0 0.0
  %117 = vmatprep.subr.mxu0 0.0
  %118 = vmatpush1.msra.mxu0 0.0
  %119 = vmatprep.subr.mxu0 0.0
  %120 = vmatpush1.msra.mxu0 %v29
  %121 = vmatprep.subr.mxu0 0.0
  %122 = vmatpush1.msra.mxu0 %v28
  %123 = vmatprep.subr.mxu0 0.0
  %124 = vmatpush1.msra.mxu0 %v27
  %125 = vmatprep.subr.mxu0 0.0
  %126 = vmatpush1.msra.mxu0 %v26
  %127 = vmatprep.subr.mxu0 0.0
  %128 = vmatpush1.msra.mxu0 %v25
  %129 = vmatprep.subr.mxu0 0.0
  %130 = vmatpush1.msra.mxu0 %v24
  %131 = vmatprep.subr.mxu0 0.0
  %132 = vmatpush1.msra.mxu0 %v23
  %133 = vmatprep.subr.mxu0 0.0
  %134 = vmatpush1.msra.mxu0 %v22
  %135 = vmatprep.subr.mxu0 0.0
  %136 = vmatpush2.msra.mxu0 0.0
  %137 = vmatprep.subr.mxu0 0.0
  %138 = vmatpush2.msra.mxu0 0.0
  %139 = vmatprep.subr.mxu0 0.0
  %140 = vmatpush2.msra.mxu0 0.0
  %141 = vmatprep.subr.mxu0 0.0
  %142 = vmatpush2.msra.mxu0 0.0
  %143 = vmatprep.subr.mxu0 0.0
  %144 = vmatpush2.msra.mxu0 0.0
  %145 = vmatprep.subr.mxu0 0.0
  %146 = vmatpush2.msra.mxu0 0.0
  %147 = vmatprep.subr.mxu0 0.0
  %148 = vmatpush2.msra.mxu0 0.0
  %149 = vmatprep.subr.mxu0 0.0
  %150 = vmatpush2.msra.mxu0 0.0
  %151 = vmatprep.subr.mxu0 0.0
  %152 = vmatpush2.msra.mxu0 0.0
  %153 = vmatprep.subr.mxu0 0.0
  %154 = vmatpush2.msra.mxu0 0.0
  %155 = vmatprep.subr.mxu0 0.0
  %156 = vmatpush2.msra.mxu0 0.0
  %157 = vmatprep.subr.mxu0 0.0
  %158 = vmatpush2.msra.mxu0 0.0
  %159 = vmatprep.subr.mxu0 0.0
  %160 = vmatpush2.msra.mxu0 0.0
  %161 = vmatprep.subr.mxu0 0.0
  %162 = vmatpush2.msra.mxu0 0.0
  %163 = vmatprep.subr.mxu0 0.0
  %164 = vmatpush2.msra.mxu0 0.0
  %165 = vmatprep.subr.mxu0 0.0
  %166 = vmatpush2.msra.mxu0 0.0
  %167 = vmatprep.mubr.f32.mxu0 0.0
  %168 = vmatmul.mubr.f32.gmra.mxu0 %v80
  %v169 = vpop.f32.mrf.mxu0
  %v170 = vadd.f32 %v41, %v169
  %v171 = vpop.f32.mrf.mxu0
  %172 = vmatprep.mubr.f32.mxu0 0.0
  %173 = vmatmul.mubr.f32.gmra.mxu0 %v83
  %v174 = vpop.f32.mrf.mxu0
  %v175 = vadd.f32 %v46, %v174
  %v176 = vpop.f32.mrf.mxu0
  %177 = vmatprep.mubr.f32.mxu0 0.0
  %178 = vmatmul.mubr.f32.gmra.mxu0 %v86
  %v179 = vpop.f32.mrf.mxu0
  %v180 = vadd.f32 %v51, %v179
  %v181 = vpop.f32.mrf.mxu0
  %182 = vmatprep.mubr.f32.mxu0 0.0
  %183 = vmatmul.mubr.f32.gmra.mxu0 %v89
  %v184 = vpop.f32.mrf.mxu0
  %v185 = vadd.f32 %v56, %v184
  %v186 = vpop.f32.mrf.mxu0
  %187 = vmatprep.mubr.f32.mxu0 0.0
  %188 = vmatmul.mubr.f32.gmra.mxu0 %v92
  %v189 = vpop.f32.mrf.mxu0
  %v190 = vadd.f32 %v61, %v189
  %v191 = vpop.f32.mrf.mxu0
  %192 = vmatprep.mubr.f32.mxu0 0.0
  %193 = vmatmul.mubr.f32.gmra.mxu0 %v95
  %v194 = vpop.f32.mrf.mxu0
  %v195 = vadd.f32 %v66, %v194
  %v196 = vpop.f32.mrf.mxu0
  %197 = vmatprep.mubr.f32.mxu0 0.0
  %198 = vmatmul.mubr.f32.gmra.mxu0 %v98
  %v199 = vpop.f32.mrf.mxu0
  %v200 = vadd.f32 %v71, %v199
  %v201 = vpop.f32.mrf.mxu0
  %202 = vmatprep.mubr.f32.mxu0 0.0
  %203 = vmatmul.mubr.f32.gmra.mxu0 %v101
  %v204 = vpop.f32.mrf.mxu0
  %v205 = vadd.f32 %v76, %v204
  %v206 = vpop.f32.mrf.mxu0
  %207 = vdwg.mxu0
  %v208 = vmax.f32 %v170, 0.0
  %v209 = vmax.f32 %v175, 0.0
  %v210 = vmax.f32 %v180, 0.0
  %v211 = vmax.f32 %v185, 0.0
  %v212 = vmax.f32 %v190, 0.0
  %v213 = vmax.f32 %v195, 0.0
  %v214 = vmax.f32 %v200, 0.0
  %v215 = vmax.f32 %v205, 0.0
  %216 = vst [vmem:[%s3] sm:$0xff] %v208
  %217 = vst [vmem:[%s3 + $0x8] sm:$0xff] %v209
  %218 = vst [vmem:[%s3 + $0x10] sm:$0xff] %v210
  %219 = vst [vmem:[%s3 + $0x18] sm:$0xff] %v211
  %220 = vst [vmem:[%s3 + $0x20] sm:$0xff] %v212
  %221 = vst [vmem:[%s3 + $0x28] sm:$0xff] %v213
  %222 = vst [vmem:[%s3 + $0x30] sm:$0xff] %v214
  %223 = vst [vmem:[%s3 + $0x38] sm:$0xff] %v215
  // Predicated region
  $region14: #{rnumber_forward.11} parent=0 // pred_check
    _
  $region15: #{rnumber_forward.11} parent=0 // pred_check_branch
    %225 = sbr.rel (0) target = $region17
  $region16: #{rnumber_forward.11} parent=0 // pred_region
    _
  $region17: #{rnumber_forward.11} parent=0 // pred_fallthru
    _
  // Predicated region
  $region18: #{rnumber_forward.11} parent=0 // pred_check
    _
  $region19: #{rnumber_forward.11} parent=0 // pred_check_branch
    %227 = sbr.rel (0) target = $region21
  $region20: #{rnumber_forward.11} parent=0 // pred_region
    _
  $region21: #{rnumber_forward.11} parent=0 // pred_fallthru
    _

// kernel: rnumber_forward.12
$region0: #{rnumber_forward.12}
  #allocation0 [shape = 'u32[]', space=smem, size = 0x4, offset = 0x4, fixed_abs, tag = 'smem constant byte address 0x4 - core index']
  #allocation1 [shape = 'u32[144,128]{1,0:T(1,128)}', space=vmem, size = 0x12000, scoped, tag = 'internal scratch']
  %s0 = inlined_call_operand.vmem [shape: f32[4,16], index: 0, kind: input, shape index: {}]
  %s1 = inlined_call_operand.vmem [shape: f32[16,512], index: 1, kind: input, shape index: {}]
  %s2 = inlined_call_operand.vmem [shape: f32[4,1], index: 2, kind: input, shape index: {}]
  %s3 = inlined_call_operand.vmem [shape: f32[4,512], index: 3, kind: output, shape index: {}]
  %s4 = sld [smem:[#allocation0]]
  $region68: #{rnumber_forward.12} parent=0
    _
  %s6 = ssub.s32 1, %s4
  %s7 = scalar_select 0, %s6, %s4
  $region1: #{rnumber_forward.12} parent=0
    #allocation2 [shape = 'u8[32768]{0}', space=vmem, size = 0x8000, scoped, tag = 'input window, operand 1']
    loop: start=0, step=1, limit=4
    $region2: #{rnumber_forward.12} parent=1 // loop_pre_header
      _
    $region3: #{rnumber_forward.12} parent=1 // loop_header
      %s9 = sphi 0, %s13
      %p10 = scmp.ge.s32.totalorder %s9, 4
      %s17 = sphi 0, %s17
      %s19 = sphi 0, %s17
      %s20 = sphi 0, %s19
      %s34 = sphi 0, %s20
      %s40 = sphi 0, %s42
      %s43 = sphi 0, %s40
      %s44 = sphi 0, %s43
      %s60 = sphi 0, %s44
      %s64 = sphi 0, %s64
      %s66 = sphi 0, %s64
      %s67 = sphi 0, %s66
      %s81 = sphi 0, %s67
      %s87 = sphi 0, %s89
      %s90 = sphi 0, %s87
      %s91 = sphi 0, %s90
      %s107 = sphi 0, %s91
    $region4: #{rnumber_forward.12} parent=1 // loop_header_branch
      %12 = sbr.rel (%p10) target = $region8
    $region5: #{rnumber_forward.12} parent=1 // loop_body
      %s14 = ssub.s32 %s9, 1
      %s15 = ssub.s32 %s9, 2
      %s16 = sadd.s32 %s9, 1
      %s18 = sadd.s32 %s17, 1
      %p21 = scmp.eq.s32.totalorder %s9, 1
      %p22 = scmp.ne.s32.totalorder %s17, %s19
      %p23 = scmp.eq.s32.totalorder %s9, 0
      %p24 = por %p22, %p23
      %p25 = scmp.ne.s32.totalorder %s17, %s19
      %p26 = scmp.eq.s32.totalorder %s14, 1
      %p27 = por %p25, %p26
      %p28 = scmp.ne.s32.totalorder %s19, %s20
      %p29 = scmp.eq.s32.totalorder %s14, 0
      %p30 = por %p28, %p29
      %p31 = scmp.ne.s32.totalorder %s19, %s20
      %p32 = scmp.eq.s32.totalorder %s15, 1
      %p33 = por %p31, %p32
      %p35 = scmp.ne.s32.totalorder %s20, %s34
      %p36 = scmp.eq.s32.totalorder %s15, 0
      %p37 = por %p35, %p36
      %s38 = ssub.s32 %s9, %s16
      %p39 = scmp.eq.s32.totalorder %s38, 0
      %s41 = sadd.s32 %s40, 1
      %s42 = scalar_select %p39, %s40, %s41
      %p45 = pneg %p39
      %p46 = scmp.eq.s32.totalorder %s9, 1
      %p47 = por %p45, %p46
      %p48 = scmp.ne.s32.totalorder %s40, %s43
      %p49 = scmp.eq.s32.totalorder %s9, 0
      %p50 = por %p48, %p49
      %p51 = scmp.ne.s32.totalorder %s40, %s43
      %p52 = scmp.eq.s32.totalorder %s14, 1
      %p53 = por %p51, %p52
      %p54 = scmp.ne.s32.totalorder %s43, %s44
      %p55 = scmp.eq.s32.totalorder %s14, 0
      %p56 = por %p54, %p55
      %p57 = scmp.ne.s32.totalorder %s43, %s44
      %p58 = scmp.eq.s32.totalorder %s15, 1
      %p59 = por %p57, %p58
      %p61 = scmp.ne.s32.totalorder %s44, %s60
      %p62 = scmp.eq.s32.totalorder %s15, 0
      %p63 = por %p61, %p62
      %s65 = sadd.s32 %s64, 1
      %p68 = scmp.eq.s32.totalorder %s9, 1
      %p69 = scmp.ne.s32.totalorder %s64, %s66
      %p70 = scmp.eq.s32.totalorder %s9, 0
      %p71 = por %p69, %p70
      %p72 = scmp.ne.s32.totalorder %s64, %s66
      %p73 = scmp.eq.s32.totalorder %s14, 1
      %p74 = por %p72, %p73
      %p75 = scmp.ne.s32.totalorder %s66, %s67
      %p76 = scmp.eq.s32.totalorder %s14, 0
      %p77 = por %p75, %p76
      %p78 = scmp.ne.s32.totalorder %s66, %s67
      %p79 = scmp.eq.s32.totalorder %s15, 1
      %p80 = por %p78, %p79
      %p82 = scmp.ne.s32.totalorder %s67, %s81
      %p83 = scmp.eq.s32.totalorder %s15, 0
      %p84 = por %p82, %p83
      %s85 = ssub.s32 %s9, %s16
      %p86 = scmp.eq.s32.totalorder %s85, 0
      %s88 = sadd.s32 %s87, 1
      %s89 = scalar_select %p86, %s87, %s88
      %p92 = pneg %p86
      %p93 = scmp.eq.s32.totalorder %s9, 1
      %p94 = por %p92, %p93
      %p95 = scmp.ne.s32.totalorder %s87, %s90
      %p96 = scmp.eq.s32.totalorder %s9, 0
      %p97 = por %p95, %p96
      %p98 = scmp.ne.s32.totalorder %s87, %s90
      %p99 = scmp.eq.s32.totalorder %s14, 1
      %p100 = por %p98, %p99
      %p101 = scmp.ne.s32.totalorder %s90, %s91
      %p102 = scmp.eq.s32.totalorder %s14, 0
      %p103 = por %p101, %p102
      %p104 = scmp.ne.s32.totalorder %s90, %s91
      %p105 = scmp.eq.s32.totalorder %s15, 1
      %p106 = por %p104, %p105
      %p108 = scmp.ne.s32.totalorder %s91, %s107
      %p109 = scmp.eq.s32.totalorder %s15, 0
      %p110 = por %p108, %p109
      %p111 = scmp.le.s32.totalorder 1, %s9
      %p112 = scmp.lt.s32.totalorder %s9, 3
      %p113 = pnand %p111, %p112
      %p114 = pneg %p113
      // Predicated region
      $region9: #{rnumber_forward.12} parent=5 // pred_check
        _
      $region10: #{rnumber_forward.12} parent=5 // pred_check_branch
        %116 = sbr.rel (%p113) target = $region12
      $region11: #{rnumber_forward.12} parent=5 // pred_region
        %s117 = ssub.s32 %s9, 1
        // Predicated region
        $region13: #{rnumber_forward.12} parent=11 // pred_check
          %p118 = pneg %p30
        $region14: #{rnumber_forward.12} parent=11 // pred_check_branch
          %120 = sbr.rel (%p118) target = $region16
        $region15: #{rnumber_forward.12} parent=11 // pred_region
          _
        $region16: #{rnumber_forward.12} parent=11 // pred_fallthru
          _
        // Predicated region
        $region17: #{rnumber_forward.12} parent=11 // pred_check
          %p121 = pneg %p77
        $region18: #{rnumber_forward.12} parent=11 // pred_check_branch
          %123 = sbr.rel (%p121) target = $region20
        $region19: #{rnumber_forward.12} parent=11 // pred_region
          _
        $region20: #{rnumber_forward.12} parent=11 // pred_fallthru
          _
      $region12: #{rnumber_forward.12} parent=5 // pred_fallthru
        _
      %p124 = scmp.lt.s32.totalorder %s9, 2
      // Predicated region
      $region21: #{rnumber_forward.12} parent=5 // pred_check
        %p125 = pneg %p124
      $region22: #{rnumber_forward.12} parent=5 // pred_check_branch
        %127 = sbr.rel (%p125) target = $region24
      $region23: #{rnumber_forward.12} parent=5 // pred_region
        // Predicated region
        $region25: #{rnumber_forward.12} parent=23 // pred_check
          %p128 = pneg %p50
        $region26: #{rnumber_forward.12} parent=23 // pred_check_branch
          %130 = sbr.rel (%p128) target = $region28
        $region27: #{rnumber_forward.12} parent=23 // pred_region
          %s131 = sand.u32 %s40, 1
          %s132 = sand.u32 %s40, 1
          %s133 = smul.addr %s132, 32
          %s134 = scalar_lea.vmem [#allocation2], %s133
          %s135 = smul.u32 2, %s9
          %s136 = smul.addr %s135, 8
          %s137 = scalar_lea.vmem %s1, %s136
          // Predicated region
          $region29: #{rnumber_forward.12} parent=27 // pred_check
            _
          $region30: #{rnumber_forward.12} parent=27 // pred_check_branch
            %139 = sbr.rel (0) target = $region32
          $region31: #{rnumber_forward.12} parent=27 // pred_region
            // Predicated region
            $region33: #{rnumber_forward.12} parent=31 // pred_check
              _
            $region34: #{rnumber_forward.12} parent=31 // pred_check_branch
              %141 = sbr.rel (0) target = $region36
            $region35: #{rnumber_forward.12} parent=31 // pred_region
              loop: start=0, step=1, limit=1
              $region37: #{rnumber_forward.12} parent=35 // loop_pre_header
                _
              $region38: #{rnumber_forward.12} parent=35 // loop_header
                %s143 = sphi 0, %s147
                %p144 = scmp.ge.s32.totalorder %s143, 1
                %s148 = sphi %s137, %s137
                %s149 = sphi %s134, %s134
              $region39: #{rnumber_forward.12} parent=35 // loop_header_branch
                %146 = sbr.rel (%p144) target = $region43
              $region40: #{rnumber_forward.12} parent=35 // loop_body
                %v150 = vld [vmem:[%s148] sm:$0xff]
                %151 = vst [vmem:[%s149] sm:$0xff] %v150
                %v152 = vld [vmem:[%s148 + $0x8] sm:$0xff]
                %153 = vst [vmem:[%s149 + $0x8] sm:$0xff] %v152
                %v154 = vld [vmem:[%s148 + $0x20] sm:$0xff]
                %155 = vst [vmem:[%s149 + $0x10] sm:$0xff] %v154
                %v156 = vld [vmem:[%s148 + $0x28] sm:$0xff]
                %157 = vst [vmem:[%s149 + $0x18] sm:$0xff] %v156
              $region41: #{rnumber_forward.12} parent=35 // loop_footer
                %s147 = sadd.s32 1, %s143
              $region42: #{rnumber_forward.12} parent=35 // loop_footer_branch
                %142 = sbr.rel target = $region38
              $region43: #{rnumber_forward.12} parent=35 // loop_exit
                _
            $region36: #{rnumber_forward.12} parent=31 // pred_fallthru
              _
            // Predicated region
            $region44: #{rnumber_forward.12} parent=31 // pred_check
              _
            $region45: #{rnumber_forward.12} parent=31 // pred_check_branch
              %159 = sbr.rel target = $region47
            $region46: #{rnumber_forward.12} parent=31 // pred_region
              _
            $region47: #{rnumber_forward.12} parent=31 // pred_fallthru
              _
          $region32: #{rnumber_forward.12} parent=27 // pred_fallthru
            _
          %160 = vnop
        $region28: #{rnumber_forward.12} parent=23 // pred_fallthru
          _
      $region24: #{rnumber_forward.12} parent=5 // pred_fallthru
        _
      %p161 = scmp.le.s32.totalorder 1, %s9
      %p162 = scmp.lt.s32.totalorder %s9, 3
      %p163 = pnand %p161, %p162
      %p164 = pneg %p163
      // Predicated region
      $region48: #{rnumber_forward.12} parent=5 // pred_check
        _
      $region49: #{rnumber_forward.12} parent=5 // pred_check_branch
        %166 = sbr.rel (%p163) target = $region51
      $region50: #{rnumber_forward.12} parent=5 // pred_region
        %s167 = ssub.s32 %s9, 1
        %s168 = sand.u32 %s43, 1
        %s169 = sand.u32 %s43, 1
        %s170 = smul.addr %s169, 32
        %s171 = scalar_lea.vmem [#allocation2], %s170
        // Predicated region
        $region52: #{rnumber_forward.12} parent=50 // pred_check
          %p172 = pneg %p56
        $region53: #{rnumber_forward.12} parent=50 // pred_check_branch
          %174 = sbr.rel (%p172) target = $region55
        $region54: #{rnumber_forward.12} parent=50 // pred_region
          _
        $region55: #{rnumber_forward.12} parent=50 // pred_fallthru
          _
        %p175 = pneg %p30
        %p176 = pneg %p27
        %s177 = sand.u32 %s43, 1
        %s178 = sand.u32 %s43, 1
        %s179 = smul.addr %s178, 32
        %s180 = scalar_lea.vmem [#allocation2], %s179
        %p181 = pneg %p56
        %p182 = pneg %p53
        %p183 = pneg %p77
        %p184 = pneg %p74
        %p185 = pneg %p103
        %p186 = pneg %p100
        %s187 = smul.u32 2, %s14
        %p188 = scmp.lt.s32.totalorder %s187, 3
        %s189 = scalar_select %p188, %s187, 3
        %s190 = smul.addr %s189, 4
        %s191 = scalar_lea.vmem %s3, %s190
        %s192 = smul.u32 2, %s14
        %s193 = smul.u32 2, %s14
        %p194 = scmp.lt.s32.totalorder %s193, 3
        %s195 = scalar_select %p194, %s193, 3
        %s196 = smul.addr %s195, 4
        %s197 = scalar_lea.vmem %s3, %s196
        %s198 = smul.u32 2, %s14
        %v199 = vld [vmem:[%s0] sm:$0xf]
        %v200 = vld [vmem:[%s171] sm:$0xff]
        %v201 = vld [vmem:[%s171 + $0x8] sm:$0xff]
        %v202 = vld [vmem:[%s171 + $0x10] sm:$0xff]
        %v203 = vld [vmem:[%s171 + $0x18] sm:$0xff]
        %v204 = vld [vmem:[%s2] sm:$0xf]
        %206 = vset.pattern.permute.xlu0 0
        %207 = vperm.xlu0 %206, %v204
        %v208 = vpop.permute.xlu0 %207
        %vm210 = vcmask 130048
        %v212 = vsel %vm210, %v199, 0
        %214 = vmatprep.subr.mxu0 0.0
        %215 = vmatpush1.msra.mxu0 0.0
        %216 = vmatprep.subr.mxu0 0.0
        %217 = vmatpush1.msra.mxu0 0.0
        %218 = vmatprep.subr.mxu0 0.0
        %219 = vmatpush1.msra.mxu0 0.0
        %220 = vmatprep.subr.mxu0 0.0
        %221 = vmatpush1.msra.mxu0 0.0
        %222 = vmatprep.subr.mxu0 0.0
        %223 = vmatpush1.msra.mxu0 0.0
        %224 = vmatprep.subr.mxu0 0.0
        %225 = vmatpush1.msra.mxu0 0.0
        %226 = vmatprep.subr.mxu0 0.0
        %227 = vmatpush1.msra.mxu0 0.0
        %228 = vmatprep.subr.mxu0 0.0
        %229 = vmatpush1.msra.mxu0 0.0
        %230 = vmatprep.subr.mxu0 0.0
        %231 = vmatpush1.msra.mxu0 0.0
        %232 = vmatprep.subr.mxu0 0.0
        %233 = vmatpush1.msra.mxu0 0.0
        %234 = vmatprep.subr.mxu0 0.0
        %235 = vmatpush1.msra.mxu0 0.0
        %236 = vmatprep.subr.mxu0 0.0
        %237 = vmatpush1.msra.mxu0 0.0
        %238 = vmatprep.subr.mxu0 0.0
        %239 = vmatpush1.msra.mxu0 0.0
        %240 = vmatprep.subr.mxu0 0.0
        %241 = vmatpush1.msra.mxu0 0.0
        %242 = vmatprep.subr.mxu0 %v203
        %243 = vmatpush1.msra.mxu0 %v202
        %244 = vmatprep.subr.mxu0 %v201
        %245 = vmatpush1.msra.mxu0 %v200
        %246 = vmatprep.subr.mxu0 0.0
        %247 = vmatpush2.msra.mxu0 0.0
        %248 = vmatprep.subr.mxu0 0.0
        %249 = vmatpush2.msra.mxu0 0.0
        %250 = vmatprep.subr.mxu0 0.0
        %251 = vmatpush2.msra.mxu0 0.0
        %252 = vmatprep.subr.mxu0 0.0
        %253 = vmatpush2.msra.mxu0 0.0
        %254 = vmatprep.subr.mxu0 0.0
        %255 = vmatpush2.msra.mxu0 0.0
        %256 = vmatprep.subr.mxu0 0.0
        %257 = vmatpush2.msra.mxu0 0.0
        %258 = vmatprep.subr.mxu0 0.0
        %259 = vmatpush2.msra.mxu0 0.0
        %260 = vmatprep.subr.mxu0 0.0
        %261 = vmatpush2.msra.mxu0 0.0
        %262 = vmatprep.subr.mxu0 0.0
        %263 = vmatpush2.msra.mxu0 0.0
        %264 = vmatprep.subr.mxu0 0.0
        %265 = vmatpush2.msra.mxu0 0.0
        %266 = vmatprep.subr.mxu0 0.0
        %267 = vmatpush2.msra.mxu0 0.0
        %268 = vmatprep.subr.mxu0 0.0
        %269 = vmatpush2.msra.mxu0 0.0
        %270 = vmatprep.subr.mxu0 0.0
        %271 = vmatpush2.msra.mxu0 0.0
        %272 = vmatprep.subr.mxu0 0.0
        %273 = vmatpush2.msra.mxu0 0.0
        %274 = vmatprep.subr.mxu0 0.0
        %275 = vmatpush2.msra.mxu0 0.0
        %276 = vmatprep.subr.mxu0 0.0
        %277 = vmatpush2.msra.mxu0 0.0
        %278 = vmatprep.mubr.f32.mxu0 0.0
        %279 = vmatmul.mubr.f32.gmra.mxu0 %v212
        %v280 = vpop.f32.mrf.mxu0
        %v281 = vadd.f32 %v208, %v280
        %v282 = vpop.f32.mrf.mxu0
        %v283 = vadd.f32 %v208, %v282
        %284 = vdwg.mxu0
        %v287 = vcombine.low %v281, %v283
        %289 = vst [vmem:[%s197] sm:$0xff] %v287
        %s290 = smul.u32 2, %s14
        %p291 = scmp.lt.s32.totalorder %s290, 3
        %s292 = scalar_select %p291, %s290, 3
        %s293 = smul.addr %s292, 4
        %s294 = scalar_lea.vmem %s3, %s293
        // Predicated region
        $region56: #{rnumber_forward.12} parent=50 // pred_check
          %p295 = pneg %p100
        $region57: #{rnumber_forward.12} parent=50 // pred_check_branch
          %297 = sbr.rel (%p295) target = $region59
        $region58: #{rnumber_forward.12} parent=50 // pred_region
          %s298 = smul.u32 2, %s14
        $region59: #{rnumber_forward.12} parent=50 // pred_fallthru
          _
      $region51: #{rnumber_forward.12} parent=5 // pred_fallthru
        _
      %p299 = scmp.le.s32.totalorder 2, %s9
      // Predicated region
      $region60: #{rnumber_forward.12} parent=5 // pred_check
        %p300 = pneg %p299
      $region61: #{rnumber_forward.12} parent=5 // pred_check_branch
        %302 = sbr.rel (%p300) target = $region63
      $region62: #{rnumber_forward.12} parent=5 // pred_region
        %s303 = ssub.s32 %s9, 2
        // Predicated region
        $region64: #{rnumber_forward.12} parent=62 // pred_check
          %p304 = pneg %p106
        $region65: #{rnumber_forward.12} parent=62 // pred_check_branch
          %306 = sbr.rel (%p304) target = $region67
        $region66: #{rnumber_forward.12} parent=62 // pred_region
          %s307 = smul.u32 2, %s15
          %p308 = scmp.lt.s32.totalorder %s307, 3
          %s309 = scalar_select %p308, %s307, 3
          %s310 = smul.addr %s309, 4
          %s311 = scalar_lea.vmem %s3, %s310
        $region67: #{rnumber_forward.12} parent=62 // pred_fallthru
          _
      $region63: #{rnumber_forward.12} parent=5 // pred_fallthru
        _
    $region6: #{rnumber_forward.12} parent=1 // loop_footer
      %s13 = sadd.s32 1, %s9
    $region7: #{rnumber_forward.12} parent=1 // loop_footer_branch
      %8 = sbr.rel target = $region3
    $region8: #{rnumber_forward.12} parent=1 // loop_exit
      _

// kernel: rnumber_forward.13
$region0: #{rnumber_forward.13}
  #allocation0 [shape = 'u32[]', space=smem, size = 0x4, offset = 0x4, fixed_abs, tag = 'smem constant byte address 0x4 - core index']
  #allocation1 [shape = 'u32[144,128]{1,0:T(1,128)}', space=vmem, size = 0x12000, scoped, tag = 'internal scratch']
  %s0 = inlined_call_operand.vmem [shape: f32[32,36], index: 0, kind: input, shape index: {}]
  %s1 = inlined_call_operand.vmem [shape: f32[36,384], index: 1, kind: input, shape index: {}]
  %s2 = inlined_call_operand.vmem [shape: f32[8,1], index: 2, kind: input, shape index: {}]
  %s3 = inlined_call_operand.vmem [shape: f32[8,384], index: 3, kind: output, shape index: {}]
  %s4 = sld [smem:[#allocation0]]
  $region22: #{rnumber_forward.13} parent=0
    _
  %s6 = ssub.s32 1, %s4
  %s7 = scalar_select 0, %s6, %s4
  // Predicated region
  $region2: #{rnumber_forward.13} parent=0 // pred_check
    _
  $region3: #{rnumber_forward.13} parent=0 // pred_check_branch
    %9 = sbr.rel (0) target = $region5
  $region4: #{rnumber_forward.13} parent=0 // pred_region
    _
  $region5: #{rnumber_forward.13} parent=0 // pred_fallthru
    _
  // Predicated region
  $region6: #{rnumber_forward.13} parent=0 // pred_check
    _
  $region7: #{rnumber_forward.13} parent=0 // pred_check_branch
    %11 = sbr.rel (0) target = $region9
  $region8: #{rnumber_forward.13} parent=0 // pred_region
    _
  $region9: #{rnumber_forward.13} parent=0 // pred_fallthru
    _
  // Predicated region
  $region10: #{rnumber_forward.13} parent=0 // pred_check
    _
  $region11: #{rnumber_forward.13} parent=0 // pred_check_branch
    %13 = sbr.rel (0) target = $region13
  $region12: #{rnumber_forward.13} parent=0 // pred_region
    _
  $region13: #{rnumber_forward.13} parent=0 // pred_fallthru
    _
  %v14 = vld [vmem:[%s0] sm:$0xff]
  %v15 = vld [vmem:[%s0 + $0x8] sm:$0xff]
  %v16 = vld [vmem:[%s0 + $0x10] sm:$0xff]
  %v17 = vld [vmem:[%s0 + $0x18] sm:$0xff]
  %v18 = vld [vmem:[%s1] sm:$0xff]
  %v19 = vld [vmem:[%s1 + $0x8] sm:$0xff]
  %v20 = vld [vmem:[%s1 + $0x10] sm:$0xff]
  %v21 = vld [vmem:[%s1 + $0x18] sm:$0xff]
  %v22 = vld [vmem:[%s1 + $0x20] sm:$0xff]
  %v23 = vld [vmem:[%s1 + $0x28] sm:$0xff]
  %v24 = vld [vmem:[%s1 + $0x30] sm:$0xff]
  %v25 = vld [vmem:[%s1 + $0x38] sm:$0xff]
  %v26 = vld [vmem:[%s1 + $0x40] sm:$0xff]
  %v27 = vld [vmem:[%s1 + $0x48] sm:$0xff]
  %v28 = vld [vmem:[%s1 + $0x50] sm:$0xff]
  %v29 = vld [vmem:[%s1 + $0x58] sm:$0xff]
  %v30 = vld [vmem:[%s1 + $0x60] sm:$0xf]
  %v31 = vld [vmem:[%s1 + $0x68] sm:$0xf]
  %v32 = vld [vmem:[%s1 + $0x70] sm:$0xf]
  %vm33 = vcmask 293888
  %v35 = vsel %vm33, %v14, 0
  %v38 = vsel %vm33, %v15, 0
  %v41 = vsel %vm33, %v16, 0
  %v44 = vsel %vm33, %v17, 0
  %vm46 = vcmask 1043456
  %v48 = vsel %vm46, %v30, 0
  %v51 = vsel %vm46, %v31, 0
  %v54 = vsel %vm46, %v32, 0
  %56 = vmatprep.subr.mxu0 0.0
  %57 = vmatpush1.msra.mxu0 0.0
  %58 = vmatprep.subr.mxu0 0.0
  %59 = vmatpush1.msra.mxu0 0.0
  %60 = vmatprep.subr.mxu0 0.0
  %61 = vmatpush1.msra.mxu0 0.0
  %62 = vmatprep.subr.mxu0 0.0
  %63 = vmatpush1.msra.mxu0 0.0
  %64 = vmatprep.subr.mxu0 0.0
  %65 = vmatpush1.msra.mxu0 0.0
  %66 = vmatprep.subr.mxu0 0.0
  %67 = vmatpush1.msra.mxu0 0.0
  %68 = vmatprep.subr.mxu0 0.0
  %69 = vmatpush1.msra.mxu0 0.0
  %70 = vmatprep.subr.mxu0 0.0
  %71 = vmatpush1.msra.mxu0 0.0
  %72 = vmatprep.subr.mxu0 0.0
  %73 = vmatpush1.msra.mxu0 0.0
  %74 = vmatprep.subr.mxu0 0.0
  %75 = vmatpush1.msra.mxu0 0.0
  %76 = vmatprep.subr.mxu0 0.0
  %77 = vmatpush1.msra.mxu0 0.0
  %78 = vmatprep.subr.mxu0 %v51
  %79 = vmatpush1.msra.mxu0 %v48
  %80 = vmatprep.subr.mxu0 %v28
  %81 = vmatpush1.msra.mxu0 %v27
  %82 = vmatprep.subr.mxu0 %v25
  %83 = vmatpush1.msra.mxu0 %v24
  %84 = vmatprep.subr.mxu0 %v22
  %85 = vmatpush1.msra.mxu0 %v21
  %86 = vmatprep.subr.mxu0 %v19
  %87 = vmatpush1.msra.mxu0 %v18
  %88 = vmatprep.subr.mxu0 0.0
  %89 = vmatpush2.msra.mxu0 0.0
  %90 = vmatprep.subr.mxu0 0.0
  %91 = vmatpush2.msra.mxu0 0.0
  %92 = vmatprep.subr.mxu0 0.0
  %93 = vmatpush2.msra.mxu0 0.0
  %94 = vmatprep.subr.mxu0 0.0
  %95 = vmatpush2.msra.mxu0 0.0
  %96 = vmatprep.subr.mxu0 0.0
  %97 = vmatpush2.msra.mxu0 0.0
  %98 = vmatprep.subr.mxu0 0.0
  %99 = vmatpush2.msra.mxu0 0.0
  %100 = vmatprep.subr.mxu0 0.0
  %101 = vmatpush2.msra.mxu0 0.0
  %102 = vmatprep.subr.mxu0 0.0
  %103 = vmatpush2.msra.mxu0 0.0
  %104 = vmatprep.subr.mxu0 0.0
  %105 = vmatpush2.msra.mxu0 0.0
  %106 = vmatprep.subr.mxu0 0.0
  %107 = vmatpush2.msra.mxu0 0.0
  %108 = vmatprep.subr.mxu0 0.0
  %109 = vmatpush2.msra.mxu0 0.0
  %110 = vmatprep.subr.mxu0 0.0
  %111 = vmatpush2.msra.mxu0 0.0
  %112 = vmatprep.subr.mxu0 0.0
  %113 = vmatpush2.msra.mxu0 0.0
  %114 = vmatprep.subr.mxu0 0.0
  %115 = vmatpush2.msra.mxu0 0.0
  %116 = vmatprep.subr.mxu0 0.0
  %117 = vmatpush2.msra.mxu0 0.0
  %118 = vmatprep.subr.mxu0 0.0
  %119 = vmatpush2.msra.mxu0 0.0
  %120 = vmatprep.mubr.f32.mxu0 0.0
  %121 = vmatmul.mubr.f32.gmra.mxu0 %v35
  %v122 = vpop.f32.mrf.mxu0
  %v123 = vadd.f32 0.0, %v122
  %v124 = vpop.f32.mrf.mxu0
  %v125 = vadd.f32 0.0, %v124
  %126 = vmatprep.mubr.f32.mxu0 0.0
  %127 = vmatmul.mubr.f32.gmra.mxu0 %v38
  %v128 = vpop.f32.mrf.mxu0
  %v129 = vadd.f32 0.0, %v128
  %v130 = vpop.f32.mrf.mxu0
  %v131 = vadd.f32 0.0, %v130
  %132 = vmatprep.mubr.f32.mxu0 0.0
  %133 = vmatmul.mubr.f32.gmra.mxu0 %v41
  %v134 = vpop.f32.mrf.mxu0
  %v135 = vadd.f32 0.0, %v134
  %v136 = vpop.f32.mrf.mxu0
  %v137 = vadd.f32 0.0, %v136
  %138 = vmatprep.mubr.f32.mxu0 0.0
  %139 = vmatmul.mubr.f32.gmra.mxu0 %v44
  %v140 = vpop.f32.mrf.mxu0
  %v141 = vadd.f32 0.0, %v140
  %v142 = vpop.f32.mrf.mxu0
  %v143 = vadd.f32 0.0, %v142
  %144 = vdwg.mxu0
  %145 = vmatprep.subr.mxu0 0.0
  %146 = vmatpush1.msra.mxu0 0.0
  %147 = vmatprep.subr.mxu0 0.0
  %148 = vmatpush1.msra.mxu0 0.0
  %149 = vmatprep.subr.mxu0 0.0
  %150 = vmatpush1.msra.mxu0 0.0
  %151 = vmatprep.subr.mxu0 0.0
  %152 = vmatpush1.msra.mxu0 0.0
  %153 = vmatprep.subr.mxu0 0.0
  %154 = vmatpush1.msra.mxu0 0.0
  %155 = vmatprep.subr.mxu0 0.0
  %156 = vmatpush1.msra.mxu0 0.0
  %157 = vmatprep.subr.mxu0 0.0
  %158 = vmatpush1.msra.mxu0 0.0
  %159 = vmatprep.subr.mxu0 0.0
  %160 = vmatpush1.msra.mxu0 0.0
  %161 = vmatprep.subr.mxu0 0.0
  %162 = vmatpush1.msra.mxu0 0.0
  %163 = vmatprep.subr.mxu0 0.0
  %164 = vmatpush1.msra.mxu0 0.0
  %165 = vmatprep.subr.mxu0 0.0
  %166 = vmatpush1.msra.mxu0 0.0
  %167 = vmatprep.subr.mxu0 0.0
  %168 = vmatpush1.msra.mxu0 %v54
  %169 = vmatprep.subr.mxu0 0.0
  %170 = vmatpush1.msra.mxu0 %v29
  %171 = vmatprep.subr.mxu0 0.0
  %172 = vmatpush1.msra.mxu0 %v26
  %173 = vmatprep.subr.mxu0 0.0
  %174 = vmatpush1.msra.mxu0 %v23
  %175 = vmatprep.subr.mxu0 0.0
  %176 = vmatpush1.msra.mxu0 %v20
  %177 = vmatprep.subr.mxu0 0.0
  %178 = vmatpush2.msra.mxu0 0.0
  %179 = vmatprep.subr.mxu0 0.0
  %180 = vmatpush2.msra.mxu0 0.0
  %181 = vmatprep.subr.mxu0 0.0
  %182 = vmatpush2.msra.mxu0 0.0
  %183 = vmatprep.subr.mxu0 0.0
  %184 = vmatpush2.msra.mxu0 0.0
  %185 = vmatprep.subr.mxu0 0.0
  %186 = vmatpush2.msra.mxu0 0.0
  %187 = vmatprep.subr.mxu0 0.0
  %188 = vmatpush2.msra.mxu0 0.0
  %189 = vmatprep.subr.mxu0 0.0
  %190 = vmatpush2.msra.mxu0 0.0
  %191 = vmatprep.subr.mxu0 0.0
  %192 = vmatpush2.msra.mxu0 0.0
  %193 = vmatprep.subr.mxu0 0.0
  %194 = vmatpush2.msra.mxu0 0.0
  %195 = vmatprep.subr.mxu0 0.0
  %196 = vmatpush2.msra.mxu0 0.0
  %197 = vmatprep.subr.mxu0 0.0
  %198 = vmatpush2.msra.mxu0 0.0
  %199 = vmatprep.subr.mxu0 0.0
  %200 = vmatpush2.msra.mxu0 0.0
  %201 = vmatprep.subr.mxu0 0.0
  %202 = vmatpush2.msra.mxu0 0.0
  %203 = vmatprep.subr.mxu0 0.0
  %204 = vmatpush2.msra.mxu0 0.0
  %205 = vmatprep.subr.mxu0 0.0
  %206 = vmatpush2.msra.mxu0 0.0
  %207 = vmatprep.subr.mxu0 0.0
  %208 = vmatpush2.msra.mxu0 0.0
  %209 = vmatprep.mubr.f32.mxu0 0.0
  %210 = vmatmul.mubr.f32.gmra.mxu0 %v35
  %v211 = vpop.f32.mrf.mxu0
  %v212 = vadd.f32 0.0, %v211
  %v213 = vpop.f32.mrf.mxu0
  %214 = vmatprep.mubr.f32.mxu0 0.0
  %215 = vmatmul.mubr.f32.gmra.mxu0 %v38
  %v216 = vpop.f32.mrf.mxu0
  %v217 = vadd.f32 0.0, %v216
  %v218 = vpop.f32.mrf.mxu0
  %219 = vmatprep.mubr.f32.mxu0 0.0
  %220 = vmatmul.mubr.f32.gmra.mxu0 %v41
  %v221 = vpop.f32.mrf.mxu0
  %v222 = vadd.f32 0.0, %v221
  %v223 = vpop.f32.mrf.mxu0
  %224 = vmatprep.mubr.f32.mxu0 0.0
  %225 = vmatmul.mubr.f32.gmra.mxu0 %v44
  %v226 = vpop.f32.mrf.mxu0
  %v227 = vadd.f32 0.0, %v226
  %v228 = vpop.f32.mrf.mxu0
  %229 = vdwg.mxu0
  %v230 = vmax.f32 %v123, %v129
  %v231 = vmax.f32 %v125, %v131
  %v232 = vmax.f32 %v212, %v217
  %v233 = vmax.f32 %v230, %v135
  %v234 = vmax.f32 %v231, %v137
  %v235 = vmax.f32 %v232, %v222
  %v236 = vmax.f32 %v233, %v141
  %v237 = vmax.f32 %v234, %v143
  %v238 = vmax.f32 %v235, %v227
  %v239 = vld [vmem:[%s2] sm:$0xff]
  %241 = vset.pattern.permute.xlu0 0
  %242 = vperm.xlu0 %241, %v239
  %v243 = vpop.permute.xlu0 %242
  %v245 = vadd.f32 %v236, %v243
  %v246 = vadd.f32 %v237, %v243
  %v247 = vadd.f32 %v238, %v243
  %v248 = vmax.f32 %v245, 0.0
  %v249 = vmax.f32 %v246, 0.0
  %v250 = vmax.f32 %v247, 0.0
  %251 = vst [vmem:[%s3] sm:$0xff] %v248
  %252 = vst [vmem:[%s3 + $0x8] sm:$0xff] %v249
  %253 = vst [vmem:[%s3 + $0x10] sm:$0xff] %v250
  // Predicated region
  $region14: #{rnumber_forward.13} parent=0 // pred_check
    _
  $region15: #{rnumber_forward.13} parent=0 // pred_check_branch
    %255 = sbr.rel (0) target = $region17
  $region16: #{rnumber_forward.13} parent=0 // pred_region
    _
  $region17: #{rnumber_forward.13} parent=0 // pred_fallthru
    _
  // Predicated region
  $region18: #{rnumber_forward.13} parent=0 // pred_check
    _
  $region19: #{rnumber_forward.13} parent=0 // pred_check_branch
    %257 = sbr.rel (0) target = $region21
  $region20: #{rnumber_forward.13} parent=0 // pred_region
    _
  $region21: #{rnumber_forward.13} parent=0 // pred_fallthru
    _

// kernel: rnumber_forward.14
$region0: #{rnumber_forward.14}
  #allocation0 [shape = 'u32[]', space=smem, size = 0x4, offset = 0x4, fixed_abs, tag = 'smem constant byte address 0x4 - core index']
  #allocation1 [shape = 'u32[144,128]{1,0:T(1,128)}', space=vmem, size = 0x12000, scoped, tag = 'internal scratch']
  %s0 = inlined_call_operand.vmem [shape: f32[64,216], index: 0, kind: input, shape index: {}]
  %s1 = inlined_call_operand.vmem [shape: f32[216,128], index: 1, kind: input, shape index: {}]
  %s2 = inlined_call_operand.vmem [shape: f32[16,1], index: 2, kind: input, shape index: {}]
  %s3 = inlined_call_operand.vmem [shape: f32[16,128], index: 3, kind: output, shape index: {}]
  %s4 = sld [smem:[#allocation0]]
  $region22: #{rnumber_forward.14} parent=0
    _
  %s6 = ssub.s32 1, %s4
  %s7 = scalar_select 0, %s6, %s4
  // Predicated region
  $region2: #{rnumber_forward.14} parent=0 // pred_check
    _
  $region3: #{rnumber_forward.14} parent=0 // pred_check_branch
    %9 = sbr.rel (0) target = $region5
  $region4: #{rnumber_forward.14} parent=0 // pred_region
    _
  $region5: #{rnumber_forward.14} parent=0 // pred_fallthru
    _
  // Predicated region
  $region6: #{rnumber_forward.14} parent=0 // pred_check
    _
  $region7: #{rnumber_forward.14} parent=0 // pred_check_branch
    %11 = sbr.rel (0) target = $region9
  $region8: #{rnumber_forward.14} parent=0 // pred_region
    _
  $region9: #{rnumber_forward.14} parent=0 // pred_fallthru
    _
  // Predicated region
  $region10: #{rnumber_forward.14} parent=0 // pred_check
    _
  $region11: #{rnumber_forward.14} parent=0 // pred_check_branch
    %13 = sbr.rel (0) target = $region13
  $region12: #{rnumber_forward.14} parent=0 // pred_region
    _
  $region13: #{rnumber_forward.14} parent=0 // pred_fallthru
    _
  %v14 = vld [vmem:[%s0] sm:$0xff]
  %v15 = vld [vmem:[%s0 + $0x8] sm:$0xff]
  %v16 = vld [vmem:[%s0 + $0x10] sm:$0xff]
  %v17 = vld [vmem:[%s0 + $0x18] sm:$0xff]
  %v18 = vld [vmem:[%s0 + $0x20] sm:$0xff]
  %v19 = vld [vmem:[%s0 + $0x28] sm:$0xff]
  %v20 = vld [vmem:[%s0 + $0x30] sm:$0xff]
  %v21 = vld [vmem:[%s0 + $0x38] sm:$0xff]
  %v22 = vld [vmem:[%s0 + $0x40] sm:$0xff]
  %v23 = vld [vmem:[%s0 + $0x48] sm:$0xff]
  %v24 = vld [vmem:[%s0 + $0x50] sm:$0xff]
  %v25 = vld [vmem:[%s0 + $0x58] sm:$0xff]
  %v26 = vld [vmem:[%s0 + $0x60] sm:$0xff]
  %v27 = vld [vmem:[%s0 + $0x68] sm:$0xff]
  %v28 = vld [vmem:[%s0 + $0x70] sm:$0xff]
  %v29 = vld [vmem:[%s0 + $0x78] sm:$0xff]
  %v30 = vld [vmem:[%s1] sm:$0xff]
  %v31 = vld [vmem:[%s1 + $0x8] sm:$0xff]
  %v32 = vld [vmem:[%s1 + $0x10] sm:$0xff]
  %v33 = vld [vmem:[%s1 + $0x18] sm:$0xff]
  %v34 = vld [vmem:[%s1 + $0x20] sm:$0xff]
  %v35 = vld [vmem:[%s1 + $0x28] sm:$0xff]
  %v36 = vld [vmem:[%s1 + $0x30] sm:$0xff]
  %v37 = vld [vmem:[%s1 + $0x38] sm:$0xff]
  %v38 = vld [vmem:[%s1 + $0x40] sm:$0xff]
  %v39 = vld [vmem:[%s1 + $0x48] sm:$0xff]
  %v40 = vld [vmem:[%s1 + $0x50] sm:$0xff]
  %v41 = vld [vmem:[%s1 + $0x58] sm:$0xff]
  %v42 = vld [vmem:[%s1 + $0x60] sm:$0xff]
  %v43 = vld [vmem:[%s1 + $0x68] sm:$0xff]
  %v44 = vld [vmem:[%s1 + $0x70] sm:$0xff]
  %v45 = vld [vmem:[%s1 + $0x78] sm:$0xff]
  %v46 = vld [vmem:[%s1 + $0x80] sm:$0xff]
  %v47 = vld [vmem:[%s1 + $0x88] sm:$0xff]
  %v48 = vld [vmem:[%s1 + $0x90] sm:$0xff]
  %v49 = vld [vmem:[%s1 + $0x98] sm:$0xff]
  %v50 = vld [vmem:[%s1 + $0xa0] sm:$0xff]
  %v51 = vld [vmem:[%s1 + $0xa8] sm:$0xff]
  %v52 = vld [vmem:[%s1 + $0xb0] sm:$0xff]
  %v53 = vld [vmem:[%s1 + $0xb8] sm:$0xff]
  %v54 = vld [vmem:[%s1 + $0xc0] sm:$0xff]
  %v55 = vld [vmem:[%s1 + $0xc8] sm:$0xff]
  %v56 = vld [vmem:[%s1 + $0xd0] sm:$0xff]
  %vm57 = vcmask 719872
  %v59 = vsel %vm57, %v15, 0
  %v62 = vsel %vm57, %v17, 0
  %v65 = vsel %vm57, %v19, 0
  %v68 = vsel %vm57, %v21, 0
  %v71 = vsel %vm57, %v23, 0
  %v74 = vsel %vm57, %v25, 0
  %v77 = vsel %vm57, %v27, 0
  %v80 = vsel %vm57, %v29, 0
  %82 = vmatprep.subr.mxu0 0.0
  %83 = vmatpush1.msra.mxu0 %v45
  %84 = vmatprep.subr.mxu0 0.0
  %85 = vmatpush1.msra.mxu0 %v44
  %86 = vmatprep.subr.mxu0 0.0
  %87 = vmatpush1.msra.mxu0 %v43
  %88 = vmatprep.subr.mxu0 0.0
  %89 = vmatpush1.msra.mxu0 %v42
  %90 = vmatprep.subr.mxu0 0.0
  %91 = vmatpush1.msra.mxu0 %v41
  %92 = vmatprep.subr.mxu0 0.0
  %93 = vmatpush1.msra.mxu0 %v40
  %94 = vmatprep.subr.mxu0 0.0
  %95 = vmatpush1.msra.mxu0 %v39
  %96 = vmatprep.subr.mxu0 0.0
  %97 = vmatpush1.msra.mxu0 %v38
  %98 = vmatprep.subr.mxu0 0.0
  %99 = vmatpush1.msra.mxu0 %v37
  %100 = vmatprep.subr.mxu0 0.0
  %101 = vmatpush1.msra.mxu0 %v36
  %102 = vmatprep.subr.mxu0 0.0
  %103 = vmatpush1.msra.mxu0 %v35
  %104 = vmatprep.subr.mxu0 0.0
  %105 = vmatpush1.msra.mxu0 %v34
  %106 = vmatprep.subr.mxu0 0.0
  %107 = vmatpush1.msra.mxu0 %v33
  %108 = vmatprep.subr.mxu0 0.0
  %109 = vmatpush1.msra.mxu0 %v32
  %110 = vmatprep.subr.mxu0 0.0
  %111 = vmatpush1.msra.mxu0 %v31
  %112 = vmatprep.subr.mxu0 0.0
  %113 = vmatpush1.msra.mxu0 %v30
  %114 = vmatprep.subr.mxu0 0.0
  %115 = vmatpush2.msra.mxu0 0.0
  %116 = vmatprep.subr.mxu0 0.0
  %117 = vmatpush2.msra.mxu0 0.0
  %118 = vmatprep.subr.mxu0 0.0
  %119 = vmatpush2.msra.mxu0 0.0
  %120 = vmatprep.subr.mxu0 0.0
  %121 = vmatpush2.msra.mxu0 0.0
  %122 = vmatprep.subr.mxu0 0.0
  %123 = vmatpush2.msra.mxu0 0.0
  %124 = vmatprep.subr.mxu0 0.0
  %125 = vmatpush2.msra.mxu0 %v56
  %126 = vmatprep.subr.mxu0 0.0
  %127 = vmatpush2.msra.mxu0 %v55
  %128 = vmatprep.subr.mxu0 0.0
  %129 = vmatpush2.msra.mxu0 %v54
  %130 = vmatprep.subr.mxu0 0.0
  %131 = vmatpush2.msra.mxu0 %v53
  %132 = vmatprep.subr.mxu0 0.0
  %133 = vmatpush2.msra.mxu0 %v52
  %134 = vmatprep.subr.mxu0 0.0
  %135 = vmatpush2.msra.mxu0 %v51
  %136 = vmatprep.subr.mxu0 0.0
  %137 = vmatpush2.msra.mxu0 %v50
  %138 = vmatprep.subr.mxu0 0.0
  %139 = vmatpush2.msra.mxu0 %v49
  %140 = vmatprep.subr.mxu0 0.0
  %141 = vmatpush2.msra.mxu0 %v48
  %142 = vmatprep.subr.mxu0 0.0
  %143 = vmatpush2.msra.mxu0 %v47
  %144 = vmatprep.subr.mxu0 0.0
  %145 = vmatpush2.msra.mxu0 %v46
  %146 = vmatprep.mubr.f32.mxu0 %v59
  %147 = vmatmul.mubr.f32.gmra.mxu0 %v14
  %v148 = vpop.f32.mrf.mxu0
  %v149 = vadd.f32 0.0, %v148
  %v150 = vpop.f32.mrf.mxu0
  %151 = vmatprep.mubr.f32.mxu0 %v62
  %152 = vmatmul.mubr.f32.gmra.mxu0 %v16
  %v153 = vpop.f32.mrf.mxu0
  %v154 = vadd.f32 0.0, %v153
  %v155 = vpop.f32.mrf.mxu0
  %156 = vmatprep.mubr.f32.mxu0 %v65
  %157 = vmatmul.mubr.f32.gmra.mxu0 %v18
  %v158 = vpop.f32.mrf.mxu0
  %v159 = vadd.f32 0.0, %v158
  %v160 = vpop.f32.mrf.mxu0
  %161 = vmatprep.mubr.f32.mxu0 %v68
  %162 = vmatmul.mubr.f32.gmra.mxu0 %v20
  %v163 = vpop.f32.mrf.mxu0
  %v164 = vadd.f32 0.0, %v163
  %v165 = vpop.f32.mrf.mxu0
  %166 = vmatprep.mubr.f32.mxu0 %v71
  %167 = vmatmul.mubr.f32.gmra.mxu0 %v22
  %v168 = vpop.f32.mrf.mxu0
  %v169 = vadd.f32 0.0, %v168
  %v170 = vpop.f32.mrf.mxu0
  %171 = vmatprep.mubr.f32.mxu0 %v74
  %172 = vmatmul.mubr.f32.gmra.mxu0 %v24
  %v173 = vpop.f32.mrf.mxu0
  %v174 = vadd.f32 0.0, %v173
  %v175 = vpop.f32.mrf.mxu0
  %176 = vmatprep.mubr.f32.mxu0 %v77
  %177 = vmatmul.mubr.f32.gmra.mxu0 %v26
  %v178 = vpop.f32.mrf.mxu0
  %v179 = vadd.f32 0.0, %v178
  %v180 = vpop.f32.mrf.mxu0
  %181 = vmatprep.mubr.f32.mxu0 %v80
  %182 = vmatmul.mubr.f32.gmra.mxu0 %v28
  %v183 = vpop.f32.mrf.mxu0
  %v184 = vadd.f32 0.0, %v183
  %v185 = vpop.f32.mrf.mxu0
  %186 = vdwg.mxu0
  %v187 = vmax.f32 %v149, %v159
  %v188 = vmax.f32 %v154, %v164
  %v189 = vmax.f32 %v187, %v169
  %v190 = vmax.f32 %v188, %v174
  %v191 = vmax.f32 %v189, %v179
  %v192 = vmax.f32 %v190, %v184
  %v193 = vld [vmem:[%s2] sm:$0xff]
  %v194 = vld [vmem:[%s2 + $0x8] sm:$0xff]
  %196 = vset.pattern.permute.xlu0 0
  %197 = vperm.xlu0 %196, %v193
  %v198 = vpop.permute.xlu0 %197
  %201 = vset.pattern.permute.xlu0 0
  %202 = vperm.xlu0 %201, %v194
  %v203 = vpop.permute.xlu0 %202
  %v205 = vadd.f32 %v191, %v198
  %v206 = vadd.f32 %v192, %v203
  %v207 = vmax.f32 %v205, 0.0
  %v208 = vmax.f32 %v206, 0.0
  %209 = vst [vmem:[%s3] sm:$0xff] %v207
  %210 = vst [vmem:[%s3 + $0x8] sm:$0xff] %v208
  // Predicated region
  $region14: #{rnumber_forward.14} parent=0 // pred_check
    _
  $region15: #{rnumber_forward.14} parent=0 // pred_check_branch
    %212 = sbr.rel (0) target = $region17
  $region16: #{rnumber_forward.14} parent=0 // pred_region
    _
  $region17: #{rnumber_forward.14} parent=0 // pred_fallthru
    _
  // Predicated region
  $region18: #{rnumber_forward.14} parent=0 // pred_check
    _
  $region19: #{rnumber_forward.14} parent=0 // pred_check_branch
    %214 = sbr.rel (0) target = $region21
  $region20: #{rnumber_forward.14} parent=0 // pred_region
    _
  $region21: #{rnumber_forward.14} parent=0 // pred_fallthru
    _

// kernel: rnumber_forward.15
$region0: #{rnumber_forward.15}
  #allocation0 [shape = 'u32[]', space=smem, size = 0x4, offset = 0x4, fixed_abs, tag = 'smem constant byte address 0x4 - core index']
  #allocation1 [shape = 'u32[144,128]{1,0:T(1,128)}', space=vmem, size = 0x12000, scoped, tag = 'internal scratch']
  %s0 = inlined_call_operand.vmem [shape: f32[2,256], index: 0, kind: input, shape index: {}]
  %s1 = inlined_call_operand.vmem [shape: f32[256,120], index: 1, kind: input, shape index: {}]
  %s2 = inlined_call_operand.vmem [shape: f32[1,120], index: 2, kind: input, shape index: {}]
  %s3 = inlined_call_operand.vmem [shape: f32[120,84], index: 3, kind: input, shape index: {}]
  %s4 = inlined_call_operand.vmem [shape: f32[1,84], index: 4, kind: input, shape index: {}]
  %s5 = inlined_call_operand.vmem [shape: f32[84,10], index: 5, kind: input, shape index: {}]
  %s6 = inlined_call_operand.vmem [shape: f32[1,10], index: 6, kind: input, shape index: {}]
  %s7 = inlined_call_operand.hbm [shape: f32[2,10], index: 7, kind: output, shape index: {}]
  %s8 = sld [smem:[#allocation0]]
  $region38: #{rnumber_forward.15} parent=0
    _
  %s10 = ssub.s32 1, %s8
  %s11 = scalar_select 0, %s10, %s8
  $region1: #{rnumber_forward.15} parent=0
    #allocation2 [shape = 'u8[1024]{0}', space=vmem, size = 0x400, scoped, tag = 'output window, operand 0, single buffered']
    #allocation3 [shape = 's32[1]{0}', space=sflag, size = 0x4, scoped, tag = 'scoped memory for rnumber_forward.15']
    %12 = vsyncpa [#allocation3], 0
    // Predicated region
    $region2: #{rnumber_forward.15} parent=1 // pred_check
      _
    $region3: #{rnumber_forward.15} parent=1 // pred_check_branch
      %14 = sbr.rel (0) target = $region5
    $region4: #{rnumber_forward.15} parent=1 // pred_region
      _
    $region5: #{rnumber_forward.15} parent=1 // pred_fallthru
      _
    // Predicated region
    $region6: #{rnumber_forward.15} parent=1 // pred_check
      _
    $region7: #{rnumber_forward.15} parent=1 // pred_check_branch
      %16 = sbr.rel (0) target = $region9
    $region8: #{rnumber_forward.15} parent=1 // pred_region
      _
    $region9: #{rnumber_forward.15} parent=1 // pred_fallthru
      _
    // Predicated region
    $region10: #{rnumber_forward.15} parent=1 // pred_check
      _
    $region11: #{rnumber_forward.15} parent=1 // pred_check_branch
      %18 = sbr.rel (0) target = $region13
    $region12: #{rnumber_forward.15} parent=1 // pred_region
      _
    $region13: #{rnumber_forward.15} parent=1 // pred_fallthru
      _
    // Predicated region
    $region14: #{rnumber_forward.15} parent=1 // pred_check
      _
    $region15: #{rnumber_forward.15} parent=1 // pred_check_branch
      %20 = sbr.rel (0) target = $region17
    $region16: #{rnumber_forward.15} parent=1 // pred_region
      _
    $region17: #{rnumber_forward.15} parent=1 // pred_fallthru
      _
    // Predicated region
    $region18: #{rnumber_forward.15} parent=1 // pred_check
      _
    $region19: #{rnumber_forward.15} parent=1 // pred_check_branch
      %22 = sbr.rel (0) target = $region21
    $region20: #{rnumber_forward.15} parent=1 // pred_region
      _
    $region21: #{rnumber_forward.15} parent=1 // pred_fallthru
      _
    // Predicated region
    $region22: #{rnumber_forward.15} parent=1 // pred_check
      _
    $region23: #{rnumber_forward.15} parent=1 // pred_check_branch
      %24 = sbr.rel (0) target = $region25
    $region24: #{rnumber_forward.15} parent=1 // pred_region
      _
    $region25: #{rnumber_forward.15} parent=1 // pred_fallthru
      _
    // Predicated region
    $region26: #{rnumber_forward.15} parent=1 // pred_check
      _
    $region27: #{rnumber_forward.15} parent=1 // pred_check_branch
      %26 = sbr.rel (0) target = $region29
    $region28: #{rnumber_forward.15} parent=1 // pred_region
      _
    $region29: #{rnumber_forward.15} parent=1 // pred_fallthru
      _
    %v27 = vld [vmem:[%s0] sm:$0xf]
    %v28 = vld [vmem:[%s1] sm:$0xff]
    %v29 = vld [vmem:[%s1 + $0x8] sm:$0xff]
    %v30 = vld [vmem:[%s1 + $0x10] sm:$0xff]
    %v31 = vld [vmem:[%s1 + $0x18] sm:$0xff]
    %v32 = vld [vmem:[%s1 + $0x20] sm:$0xff]
    %v33 = vld [vmem:[%s1 + $0x28] sm:$0xff]
    %v34 = vld [vmem:[%s1 + $0x30] sm:$0xff]
    %v35 = vld [vmem:[%s1 + $0x38] sm:$0xff]
    %v36 = vld [vmem:[%s1 + $0x40] sm:$0xff]
    %v37 = vld [vmem:[%s1 + $0x48] sm:$0xff]
    %v38 = vld [vmem:[%s1 + $0x50] sm:$0xff]
    %v39 = vld [vmem:[%s1 + $0x58] sm:$0xff]
    %v40 = vld [vmem:[%s1 + $0x60] sm:$0xff]
    %v41 = vld [vmem:[%s1 + $0x68] sm:$0xff]
    %v42 = vld [vmem:[%s1 + $0x70] sm:$0xff]
    %v43 = vld [vmem:[%s1 + $0x78] sm:$0xff]
    %v44 = vld [vmem:[%s1 + $0x80] sm:$0xff]
    %v45 = vld [vmem:[%s1 + $0x88] sm:$0xff]
    %v46 = vld [vmem:[%s1 + $0x90] sm:$0xff]
    %v47 = vld [vmem:[%s1 + $0x98] sm:$0xff]
    %v48 = vld [vmem:[%s1 + $0xa0] sm:$0xff]
    %v49 = vld [vmem:[%s1 + $0xa8] sm:$0xff]
    %v50 = vld [vmem:[%s1 + $0xb0] sm:$0xff]
    %v51 = vld [vmem:[%s1 + $0xb8] sm:$0xff]
    %v52 = vld [vmem:[%s1 + $0xc0] sm:$0xff]
    %v53 = vld [vmem:[%s1 + $0xc8] sm:$0xff]
    %v54 = vld [vmem:[%s1 + $0xd0] sm:$0xff]
    %v55 = vld [vmem:[%s1 + $0xd8] sm:$0xff]
    %v56 = vld [vmem:[%s1 + $0xe0] sm:$0xff]
    %v57 = vld [vmem:[%s1 + $0xe8] sm:$0xff]
    %v58 = vld [vmem:[%s1 + $0xf0] sm:$0xff]
    %v59 = vld [vmem:[%s1 + $0xf8] sm:$0xff]
    %v60 = vld [vmem:[%s2] sm:$0x1]
    %v62 = vlaneseq
    %v63 = vshrl.u32 %v62, 7
    %v64 = vsub.s32 0, %v63
    %v65 = vrot.slane %v60, %v64
    %v69 = vunpack.c.l.s4 1983009808
    %v70 = vunpack.c.0.s8 %v69
    %v71 = vlaneseq
    %v72 = vshrl.u32 %v71, 7
    %v73 = vsub.s32 %v70, %v72
    %v74 = vrot.slane %v27, %v73
    %v75 = vcombine.high %v74, %v74
    %78 = vmatprep.subr.mxu0 0.0
    %79 = vmatpush1.msra.mxu0 %v43
    %80 = vmatprep.subr.mxu0 0.0
    %81 = vmatpush1.msra.mxu0 %v42
    %82 = vmatprep.subr.mxu0 0.0
    %83 = vmatpush1.msra.mxu0 %v41
    %84 = vmatprep.subr.mxu0 0.0
    %85 = vmatpush1.msra.mxu0 %v40
    %86 = vmatprep.subr.mxu0 0.0
    %87 = vmatpush1.msra.mxu0 %v39
    %88 = vmatprep.subr.mxu0 0.0
    %89 = vmatpush1.msra.mxu0 %v38
    %90 = vmatprep.subr.mxu0 0.0
    %91 = vmatpush1.msra.mxu0 %v37
    %92 = vmatprep.subr.mxu0 0.0
    %93 = vmatpush1.msra.mxu0 %v36
    %94 = vmatprep.subr.mxu0 0.0
    %95 = vmatpush1.msra.mxu0 %v35
    %96 = vmatprep.subr.mxu0 0.0
    %97 = vmatpush1.msra.mxu0 %v34
    %98 = vmatprep.subr.mxu0 0.0
    %99 = vmatpush1.msra.mxu0 %v33
    %100 = vmatprep.subr.mxu0 0.0
    %101 = vmatpush1.msra.mxu0 %v32
    %102 = vmatprep.subr.mxu0 0.0
    %103 = vmatpush1.msra.mxu0 %v31
    %104 = vmatprep.subr.mxu0 0.0
    %105 = vmatpush1.msra.mxu0 %v30
    %106 = vmatprep.subr.mxu0 0.0
    %107 = vmatpush1.msra.mxu0 %v29
    %108 = vmatprep.subr.mxu0 0.0
    %109 = vmatpush1.msra.mxu0 %v28
    %110 = vmatprep.subr.mxu0 0.0
    %111 = vmatpush2.msra.mxu0 %v59
    %112 = vmatprep.subr.mxu0 0.0
    %113 = vmatpush2.msra.mxu0 %v58
    %114 = vmatprep.subr.mxu0 0.0
    %115 = vmatpush2.msra.mxu0 %v57
    %116 = vmatprep.subr.mxu0 0.0
    %117 = vmatpush2.msra.mxu0 %v56
    %118 = vmatprep.subr.mxu0 0.0
    %119 = vmatpush2.msra.mxu0 %v55
    %120 = vmatprep.subr.mxu0 0.0
    %121 = vmatpush2.msra.mxu0 %v54
    %122 = vmatprep.subr.mxu0 0.0
    %123 = vmatpush2.msra.mxu0 %v53
    %124 = vmatprep.subr.mxu0 0.0
    %125 = vmatpush2.msra.mxu0 %v52
    %126 = vmatprep.subr.mxu0 0.0
    %127 = vmatpush2.msra.mxu0 %v51
    %128 = vmatprep.subr.mxu0 0.0
    %129 = vmatpush2.msra.mxu0 %v50
    %130 = vmatprep.subr.mxu0 0.0
    %131 = vmatpush2.msra.mxu0 %v49
    %132 = vmatprep.subr.mxu0 0.0
    %133 = vmatpush2.msra.mxu0 %v48
    %134 = vmatprep.subr.mxu0 0.0
    %135 = vmatpush2.msra.mxu0 %v47
    %136 = vmatprep.subr.mxu0 0.0
    %137 = vmatpush2.msra.mxu0 %v46
    %138 = vmatprep.subr.mxu0 0.0
    %139 = vmatpush2.msra.mxu0 %v45
    %140 = vmatprep.subr.mxu0 0.0
    %141 = vmatpush2.msra.mxu0 %v44
    %142 = vmatprep.mubr.f32.mxu0 %v75
    %143 = vmatmul.mubr.f32.gmra.mxu0 %v74
    %v144 = vpop.f32.mrf.mxu0
    %v145 = vadd.f32 %v65, %v144
    %v146 = vpop.f32.mrf.mxu0
    %147 = vdwg.mxu0
    %v148 = vmax.f32 %v145, 0.0
    %v149 = vld [vmem:[%s3] sm:$0xff]
    %v150 = vld [vmem:[%s3 + $0x8] sm:$0xff]
    %v151 = vld [vmem:[%s3 + $0x10] sm:$0xff]
    %v152 = vld [vmem:[%s3 + $0x18] sm:$0xff]
    %v153 = vld [vmem:[%s3 + $0x20] sm:$0xff]
    %v154 = vld [vmem:[%s3 + $0x28] sm:$0xff]
    %v155 = vld [vmem:[%s3 + $0x30] sm:$0xff]
    %v156 = vld [vmem:[%s3 + $0x38] sm:$0xff]
    %v157 = vld [vmem:[%s3 + $0x40] sm:$0xff]
    %v158 = vld [vmem:[%s3 + $0x48] sm:$0xff]
    %v159 = vld [vmem:[%s3 + $0x50] sm:$0xff]
    %v160 = vld [vmem:[%s3 + $0x58] sm:$0xff]
    %v161 = vld [vmem:[%s3 + $0x60] sm:$0xff]
    %v162 = vld [vmem:[%s3 + $0x68] sm:$0xff]
    %v163 = vld [vmem:[%s3 + $0x70] sm:$0xff]
    %v164 = vld [vmem:[%s4] sm:$0x1]
    %v166 = vlaneseq
    %v167 = vshrl.u32 %v166, 7
    %v168 = vsub.s32 0, %v167
    %v169 = vrot.slane %v164, %v168
    %vm171 = vcmask 982016
    %v173 = vsel %vm171, %v148, 0
    %175 = vmatprep.subr.mxu0 0.0
    %176 = vmatpush1.msra.mxu0 0.0
    %177 = vmatprep.subr.mxu0 0.0
    %178 = vmatpush1.msra.mxu0 %v163
    %179 = vmatprep.subr.mxu0 0.0
    %180 = vmatpush1.msra.mxu0 %v162
    %181 = vmatprep.subr.mxu0 0.0
    %182 = vmatpush1.msra.mxu0 %v161
    %183 = vmatprep.subr.mxu0 0.0
    %184 = vmatpush1.msra.mxu0 %v160
    %185 = vmatprep.subr.mxu0 0.0
    %186 = vmatpush1.msra.mxu0 %v159
    %187 = vmatprep.subr.mxu0 0.0
    %188 = vmatpush1.msra.mxu0 %v158
    %189 = vmatprep.subr.mxu0 0.0
    %190 = vmatpush1.msra.mxu0 %v157
    %191 = vmatprep.subr.mxu0 0.0
    %192 = vmatpush1.msra.mxu0 %v156
    %193 = vmatprep.subr.mxu0 0.0
    %194 = vmatpush1.msra.mxu0 %v155
    %195 = vmatprep.subr.mxu0 0.0
    %196 = vmatpush1.msra.mxu0 %v154
    %197 = vmatprep.subr.mxu0 0.0
    %198 = vmatpush1.msra.mxu0 %v153
    %199 = vmatprep.subr.mxu0 0.0
    %200 = vmatpush1.msra.mxu0 %v152
    %201 = vmatprep.subr.mxu0 0.0
    %202 = vmatpush1.msra.mxu0 %v151
    %203 = vmatprep.subr.mxu0 0.0
    %204 = vmatpush1.msra.mxu0 %v150
    %205 = vmatprep.subr.mxu0 0.0
    %206 = vmatpush1.msra.mxu0 %v149
    %207 = vmatprep.subr.mxu0 0.0
    %208 = vmatpush2.msra.mxu0 0.0
    %209 = vmatprep.subr.mxu0 0.0
    %210 = vmatpush2.msra.mxu0 0.0
    %211 = vmatprep.subr.mxu0 0.0
    %212 = vmatpush2.msra.mxu0 0.0
    %213 = vmatprep.subr.mxu0 0.0
    %214 = vmatpush2.msra.mxu0 0.0
    %215 = vmatprep.subr.mxu0 0.0
    %216 = vmatpush2.msra.mxu0 0.0
    %217 = vmatprep.subr.mxu0 0.0
    %218 = vmatpush2.msra.mxu0 0.0
    %219 = vmatprep.subr.mxu0 0.0
    %220 = vmatpush2.msra.mxu0 0.0
    %221 = vmatprep.subr.mxu0 0.0
    %222 = vmatpush2.msra.mxu0 0.0
    %223 = vmatprep.subr.mxu0 0.0
    %224 = vmatpush2.msra.mxu0 0.0
    %225 = vmatprep.subr.mxu0 0.0
    %226 = vmatpush2.msra.mxu0 0.0
    %227 = vmatprep.subr.mxu0 0.0
    %228 = vmatpush2.msra.mxu0 0.0
    %229 = vmatprep.subr.mxu0 0.0
    %230 = vmatpush2.msra.mxu0 0.0
    %231 = vmatprep.subr.mxu0 0.0
    %232 = vmatpush2.msra.mxu0 0.0
    %233 = vmatprep.subr.mxu0 0.0
    %234 = vmatpush2.msra.mxu0 0.0
    %235 = vmatprep.subr.mxu0 0.0
    %236 = vmatpush2.msra.mxu0 0.0
    %237 = vmatprep.subr.mxu0 0.0
    %238 = vmatpush2.msra.mxu0 0.0
    %239 = vmatprep.mubr.f32.mxu0 0.0
    %240 = vmatmul.mubr.f32.gmra.mxu0 %v173
    %v241 = vpop.f32.mrf.mxu0
    %v242 = vadd.f32 %v169, %v241
    %v243 = vpop.f32.mrf.mxu0
    %244 = vdwg.mxu0
    %v245 = vmax.f32 %v242, 0.0
    %v246 = vld [vmem:[%s5] sm:$0xff]
    %v247 = vld [vmem:[%s5 + $0x8] sm:$0xff]
    %v248 = vld [vmem:[%s5 + $0x10] sm:$0xff]
    %v249 = vld [vmem:[%s5 + $0x18] sm:$0xff]
    %v250 = vld [vmem:[%s5 + $0x20] sm:$0xff]
    %v251 = vld [vmem:[%s5 + $0x28] sm:$0xff]
    %v252 = vld [vmem:[%s5 + $0x30] sm:$0xff]
    %v253 = vld [vmem:[%s5 + $0x38] sm:$0xff]
    %v254 = vld [vmem:[%s5 + $0x40] sm:$0xff]
    %v255 = vld [vmem:[%s5 + $0x48] sm:$0xff]
    %v256 = vld [vmem:[%s5 + $0x50] sm:$0xf]
    %v257 = vld [vmem:[%s6] sm:$0x1]
    %v259 = vlaneseq
    %v260 = vshrl.u32 %v259, 7
    %v261 = vsub.s32 0, %v260
    %v262 = vrot.slane %v257, %v261
    %vm264 = vcmask 687104
    %v266 = vsel %vm264, %v245, 0
    %vm268 = vcmask 1043456
    %v270 = vsel %vm268, %v256, 0
    %272 = vmatprep.subr.mxu0 0.0
    %273 = vmatpush1.msra.mxu0 0.0
    %274 = vmatprep.subr.mxu0 0.0
    %275 = vmatpush1.msra.mxu0 0.0
    %276 = vmatprep.subr.mxu0 0.0
    %277 = vmatpush1.msra.mxu0 0.0
    %278 = vmatprep.subr.mxu0 0.0
    %279 = vmatpush1.msra.mxu0 0.0
    %280 = vmatprep.subr.mxu0 0.0
    %281 = vmatpush1.msra.mxu0 0.0
    %282 = vmatprep.subr.mxu0 0.0
    %283 = vmatpush1.msra.mxu0 %v270
    %284 = vmatprep.subr.mxu0 0.0
    %285 = vmatpush1.msra.mxu0 %v255
    %286 = vmatprep.subr.mxu0 0.0
    %287 = vmatpush1.msra.mxu0 %v254
    %288 = vmatprep.subr.mxu0 0.0
    %289 = vmatpush1.msra.mxu0 %v253
    %290 = vmatprep.subr.mxu0 0.0
    %291 = vmatpush1.msra.mxu0 %v252
    %292 = vmatprep.subr.mxu0 0.0
    %293 = vmatpush1.msra.mxu0 %v251
    %294 = vmatprep.subr.mxu0 0.0
    %295 = vmatpush1.msra.mxu0 %v250
    %296 = vmatprep.subr.mxu0 0.0
    %297 = vmatpush1.msra.mxu0 %v249
    %298 = vmatprep.subr.mxu0 0.0
    %299 = vmatpush1.msra.mxu0 %v248
    %300 = vmatprep.subr.mxu0 0.0
    %301 = vmatpush1.msra.mxu0 %v247
    %302 = vmatprep.subr.mxu0 0.0
    %303 = vmatpush1.msra.mxu0 %v246
    %304 = vmatprep.subr.mxu0 0.0
    %305 = vmatpush2.msra.mxu0 0.0
    %306 = vmatprep.subr.mxu0 0.0
    %307 = vmatpush2.msra.mxu0 0.0
    %308 = vmatprep.subr.mxu0 0.0
    %309 = vmatpush2.msra.mxu0 0.0
    %310 = vmatprep.subr.mxu0 0.0
    %311 = vmatpush2.msra.mxu0 0.0
    %312 = vmatprep.subr.mxu0 0.0
    %313 = vmatpush2.msra.mxu0 0.0
    %314 = vmatprep.subr.mxu0 0.0
    %315 = vmatpush2.msra.mxu0 0.0
    %316 = vmatprep.subr.mxu0 0.0
    %317 = vmatpush2.msra.mxu0 0.0
    %318 = vmatprep.subr.mxu0 0.0
    %319 = vmatpush2.msra.mxu0 0.0
    %320 = vmatprep.subr.mxu0 0.0
    %321 = vmatpush2.msra.mxu0 0.0
    %322 = vmatprep.subr.mxu0 0.0
    %323 = vmatpush2.msra.mxu0 0.0
    %324 = vmatprep.subr.mxu0 0.0
    %325 = vmatpush2.msra.mxu0 0.0
    %326 = vmatprep.subr.mxu0 0.0
    %327 = vmatpush2.msra.mxu0 0.0
    %328 = vmatprep.subr.mxu0 0.0
    %329 = vmatpush2.msra.mxu0 0.0
    %330 = vmatprep.subr.mxu0 0.0
    %331 = vmatpush2.msra.mxu0 0.0
    %332 = vmatprep.subr.mxu0 0.0
    %333 = vmatpush2.msra.mxu0 0.0
    %334 = vmatprep.subr.mxu0 0.0
    %335 = vmatpush2.msra.mxu0 0.0
    %336 = vmatprep.mubr.f32.mxu0 0.0
    %337 = vmatmul.mubr.f32.gmra.mxu0 %v266
    %v338 = vpop.f32.mrf.mxu0
    %v339 = vadd.f32 %v262, %v338
    %v340 = vpop.f32.mrf.mxu0
    %341 = vdwg.mxu0
    %vm342 = vcmask 74752
    %343 = vst.msk [vmem:[#allocation2] sm:$0x3] %vm342, %v339
    // Predicated region
    $region30: #{rnumber_forward.15} parent=1 // pred_check
      _
    $region31: #{rnumber_forward.15} parent=1 // pred_check_branch
      %345 = sbr.rel (0) target = $region33
    $region32: #{rnumber_forward.15} parent=1 // pred_region
      %s347 = ssub.s32 32, 32
      %348 = vsyncadd [#allocation3], %s347
      %s350 = sshll.u32 [#allocation2], 4
      %s351 = int_to_ptr.vmem [resolvable:$true] %s350
      %353 = dma.vmem_to_hbm [thread:$0]  %s351, 32, %s7, [#allocation3]
    $region33: #{rnumber_forward.15} parent=1 // pred_fallthru
      _
    // Predicated region
    $region34: #{rnumber_forward.15} parent=1 // pred_check
      _
    $region35: #{rnumber_forward.15} parent=1 // pred_check_branch
      %355 = sbr.rel (0) target = $region37
    $region36: #{rnumber_forward.15} parent=1 // pred_region
      %356 = dma.done [#allocation3], 32
    $region37: #{rnumber_forward.15} parent=1 // pred_fallthru
      _
    %357 = vsyncpa [#allocation3], 1

</llo_original>
